<compile_context>
chip_gen: v7x
topology: tpu7x:2x2x1
jax: 0.10.0
libtpu: 0.0.40
codegen_flags: <defaults>
</compile_context>

<pallas_src>
import functools
import math

import jax
import jax.numpy as jnp
from jax.experimental import pallas as pl
from jax.experimental.pallas import tpu as pltpu

EPS = 1e-5  # nn.LayerNorm default


# ----------------------------- in-kernel helpers -----------------------------

def _layernorm(x, gamma, beta):
    # x: (R, D), gamma/beta: (1, D)
    mu = jnp.mean(x, axis=-1, keepdims=True)
    var = jnp.mean((x - mu) ** 2, axis=-1, keepdims=True)
    return (x - mu) * jax.lax.rsqrt(var + EPS) * gamma + beta


# ------------------------------- fused Pallas kernel -------------------------------

def decoder_stack_kernel(x_ref, bias_ref,
                         ln1_g_ref, ln1_b_ref,
                         wqkv_ref, bqkv_ref, wo_ref, bo_ref,
                         ln2_g_ref, ln2_b_ref,
                         w1_ref, b1_ref, w2_ref, b2_ref,
                         fin_g_ref, fin_b_ref,
                         o_ref,
                         *, num_heads, num_layers, seq, d_model):
    S, D, H = seq, d_model, num_heads
    dh = D // H

    # o_ref doubles as the activation carry: it is resident for the whole grid step,
    # so no separate VMEM scratch (and no extra copy) is needed.
    o_ref[0] = x_ref[0]                                    # (S, D) f32

    # Hoist the additive-mask broadcast once per kernel invocation
    # (JAX does not CSE broadcast_in_dim; do not re-broadcast per layer/head).
    bias = jnp.broadcast_to(bias_ref[...][None, :, :], (H, S, S))

    @pl.loop(0, num_layers)
    def _(l):
        x = o_ref[0]                                       # (S, D) f32

        # ---- sublayer 1: pre-LN fused-QKV multi-head self-attention + residual ----
        h = _layernorm(x, ln1_g_ref[l], ln1_b_ref[l])
        # Single lane-dense projection: columns are [Q(D) | K(D) | V(D)],
        # 1/sqrt(dh) already folded into the Q columns / bias in the wrapper.
        qkv = jnp.dot(h, wqkv_ref[l],
                      preferred_element_type=jnp.float32) + bqkv_ref[l]   # (S, 3D)

        def split_heads(base):
            # (S, 3D) -> (H, S, dh) via static lane slices + stack on a new major
            # axis (no lane->sublane reshape, no 3-D transpose needed).
            return jnp.stack(
                [qkv[:, base + hd * dh: base + (hd + 1) * dh] for hd in range(H)],
                axis=0)

        q = split_heads(0)           # (H, S, dh)
        k = split_heads(D)
        v = split_heads(2 * D)

        # One batched einsum over all heads (canonical 'bqd,bkd->bqk' pattern).
        s = jnp.einsum("hqd,hkd->hqk", q, k,
                       preferred_element_type=jnp.float32) + bias         # (H, S, S)
        m = jnp.max(s, axis=-1, keepdims=True)
        e = jnp.exp(s - m)
        # Exact divide (pl.reciprocal(approx=True) is the EUP option at scale, but it
        # was flagged as a ~1e-3 accuracy risk by review).
        p = e / jnp.sum(e, axis=-1, keepdims=True)
        ctx = jnp.einsum("hqk,hkd->hqd", p, v,
                         preferred_element_type=jnp.float32)               # (H, S, dh)

        # Concatenate heads back along lanes, then a single (S,D)x(D,D) output proj.
        ctx2 = jnp.concatenate([ctx[hd] for hd in range(H)], axis=-1)      # (S, D)
        x = x + jnp.dot(ctx2, wo_ref[l],
                        preferred_element_type=jnp.float32) + bo_ref[l]

        # ---- sublayer 2: pre-LN feed-forward + residual ----
        h2 = _layernorm(x, ln2_g_ref[l], ln2_b_ref[l])
        ff = jnp.maximum(
            jnp.dot(h2, w1_ref[l], preferred_element_type=jnp.float32) + b1_ref[l],
            0.0)
        ff = jnp.dot(ff, w2_ref[l], preferred_element_type=jnp.float32) + b2_ref[l]
        o_ref[0] = x + ff

    # ---- final LayerNorm of the stack ----
    o_ref[0] = _layernorm(o_ref[0], fin_g_ref[...], fin_b_ref[...])


# ------------------------------- Python wrappers -------------------------------

def _stack_layer_params(layer_params, num_heads):
    """Stack per-layer params along a leading N axis; fuse QKV; fold 1/sqrt(dh)."""
    D = layer_params[0]["wq"].shape[0]
    dh = D // num_heads
    scale = 1.0 / math.sqrt(dh)

    def stack(name):
        return jnp.stack([p[name] for p in layer_params], axis=0)

    wqkv = jnp.stack(
        [jnp.concatenate([p["wq"] * scale, p["wk"], p["wv"]], axis=1)
         for p in layer_params], axis=0)                                   # (N, D, 3D)
    bqkv = jnp.stack(
        [jnp.concatenate([p["bq"] * scale, p["bk"], p["bv"]], axis=1)
         for p in layer_params], axis=0)                                   # (N, 1, 3D)

    return {
        "ln1_g": stack("ln1_g"), "ln1_b": stack("ln1_b"),                  # (N, 1, D)
        "wqkv": wqkv, "bqkv": bqkv,
        "wo": stack("wo"), "bo": stack("bo"),                              # (N,D,D)/(N,1,D)
        "ln2_g": stack("ln2_g"), "ln2_b": stack("ln2_b"),
        "w1": stack("w1"), "b1": stack("b1"),                              # (N,D,Dff)/(N,1,Dff)
        "w2": stack("w2"), "b2": stack("b2"),                              # (N,Dff,D)/(N,1,D)
    }


def decoder_stack(x, mask, layer_params, final_g, final_b, num_heads):
    B, S, D = x.shape
    N = len(layer_params)

    sp = _stack_layer_params(layer_params, num_heads)

    # additive attention bias: 0 where attend, -1e9 where masked
    bias = jnp.where(mask > 0, 0.0, -1e9).astype(jnp.float32)

    def const_spec(arr):
        nd = arr.ndim
        return pl.BlockSpec(arr.shape, lambda b, _n=nd: (0,) * _n)

    per_batch = pl.BlockSpec((1, S, D), lambda b: (b, 0, 0))

    in_specs = [
        per_batch,                       # x (one batch shard per grid step)
        const_spec(bias),                # additive mask bias, resident
        const_spec(sp["ln1_g"]), const_spec(sp["ln1_b"]),
        const_spec(sp["wqkv"]), const_spec(sp["bqkv"]),
        const_spec(sp["wo"]), const_spec(sp["bo"]),
        const_spec(sp["ln2_g"]), const_spec(sp["ln2_b"]),
        const_spec(sp["w1"]), const_spec(sp["b1"]),
        const_spec(sp["w2"]), const_spec(sp["b2"]),
        const_spec(final_g), const_spec(final_b),
    ]

    out = pl.pallas_call(
        functools.partial(decoder_stack_kernel,
                          num_heads=num_heads, num_layers=N, seq=S, d_model=D),
        out_shape=jax.ShapeDtypeStruct((B, S, D), jnp.float32),
        grid_spec=pltpu.PrefetchScalarGridSpec(
            num_scalar_prefetch=0,
            grid=(B,),                                   # batch axis, core-parallel
            in_specs=in_specs,
            out_specs=per_batch,
        ),
        compiler_params=pltpu.CompilerParams(
            dimension_semantics=("parallel",),           # uses both TCs on v7x
        ),
    )(x, bias,
      sp["ln1_g"], sp["ln1_b"],
      sp["wqkv"], sp["bqkv"], sp["wo"], sp["bo"],
      sp["ln2_g"], sp["ln2_b"],
      sp["w1"], sp["b1"], sp["w2"], sp["b2"],
      final_g, final_b)
    return out


# ------------------------------ parameter init ------------------------------

def init_layer_params(key, D, Dff):
    ks = jax.random.split(key, 6)
    n = lambda k, shape: (0.02 * jax.random.normal(k, shape)).astype(jnp.float32)
    return {
        "ln1_g": jnp.ones((1, D), jnp.float32),
        "ln1_b": jnp.zeros((1, D), jnp.float32),
        "wq": n(ks[0], (D, D)), "bq": jnp.zeros((1, D), jnp.float32),
        "wk": n(ks[1], (D, D)), "bk": jnp.zeros((1, D), jnp.float32),
        "wv": n(ks[2], (D, D)), "bv": jnp.zeros((1, D), jnp.float32),
        "wo": n(ks[3], (D, D)), "bo": jnp.zeros((1, D), jnp.float32),
        "ln2_g": jnp.ones((1, D), jnp.float32),
        "ln2_b": jnp.zeros((1, D), jnp.float32),
        "w1": n(ks[4], (D, Dff)), "b1": jnp.zeros((1, Dff), jnp.float32),
        "w2": n(ks[5], (Dff, D)), "b2": jnp.zeros((1, D), jnp.float32),
    }


# ------------------------------- pure-JAX reference -------------------------------

def _ref_ln(x, g, b):
    mu = jnp.mean(x, axis=-1, keepdims=True)
    var = jnp.mean((x - mu) ** 2, axis=-1, keepdims=True)
    return (x - mu) * jax.lax.rsqrt(var + EPS) * g + b


def ref_decoder_stack(x, mask, layer_params, final_g, final_b, H):
    B, S, D = x.shape
    dh = D // H
    for p in layer_params:
        h = _ref_ln(x, p["ln1_g"], p["ln1_b"])
        q = h @ p["wq"] + p["bq"]
        k = h @ p["wk"] + p["bk"]
        v = h @ p["wv"] + p["bv"]
        qh = q.reshape(B, S, H, dh).transpose(0, 2, 1, 3)
        kh = k.reshape(B, S, H, dh).transpose(0, 2, 1, 3)
        vh = v.reshape(B, S, H, dh).transpose(0, 2, 1, 3)
        scores = qh @ kh.transpose(0, 1, 3, 2) / math.sqrt(dh)
        scores = jnp.where(mask[None, None] > 0, scores, -1e9)
        attn = jax.nn.softmax(scores, axis=-1)
        ctx = (attn @ vh).transpose(0, 2, 1, 3).reshape(B, S, D)
        x = x + ctx @ p["wo"] + p["bo"]
        h2 = _ref_ln(x, p["ln2_g"], p["ln2_b"])
        ff = jnp.maximum(h2 @ p["w1"] + p["b1"], 0.0) @ p["w2"] + p["b2"]
        x = x + ff
    return _ref_ln(x, final_g, final_b)


# ------------------------------------ main ------------------------------------

if __name__ == "__main__":
    B, S, D, H, Dff, N = 2, 8, 32, 4, 64, 2

    key = jax.random.PRNGKey(0)
    kx, kp = jax.random.split(key)

    x = jax.random.normal(kx, (B, S, D), dtype=jnp.float32)
    # causal mask: 1 where position j <= i
    mask = jnp.tril(jnp.ones((S, S), jnp.float32))

    layer_params = [init_layer_params(jax.random.fold_in(kp, i), D, Dff)
                    for i in range(N)]
    final_g = jnp.ones((1, D), jnp.float32)
    final_b = jnp.zeros((1, D), jnp.float32)

    out = decoder_stack(x, mask, layer_params, final_g, final_b, H)
    out = jax.block_until_ready(out)

    ref = ref_decoder_stack(x, mask, layer_params, final_g, final_b, H)
    assert out.shape == (B, S, D)
    assert jnp.allclose(out, ref, rtol=1e-3, atol=1e-3), "mismatch vs reference"

    print("KERNEL_OK")
</pallas_src>

<mosaic_0001>
module attributes {stable_mosaic.version = 11 : i64} {
  func.func @decoder_stack_kernel(%arg0: i32, %arg1: memref<1x8x32xf32, #tpu.memory_space<vmem>>, %arg2: memref<8x8xf32, #tpu.memory_space<vmem>>, %arg3: memref<2x1x32xf32, #tpu.memory_space<vmem>>, %arg4: memref<2x1x32xf32, #tpu.memory_space<vmem>>, %arg5: memref<2x32x96xf32, #tpu.memory_space<vmem>>, %arg6: memref<2x1x96xf32, #tpu.memory_space<vmem>>, %arg7: memref<2x32x32xf32, #tpu.memory_space<vmem>>, %arg8: memref<2x1x32xf32, #tpu.memory_space<vmem>>, %arg9: memref<2x1x32xf32, #tpu.memory_space<vmem>>, %arg10: memref<2x1x32xf32, #tpu.memory_space<vmem>>, %arg11: memref<2x32x64xf32, #tpu.memory_space<vmem>>, %arg12: memref<2x1x64xf32, #tpu.memory_space<vmem>>, %arg13: memref<2x64x32xf32, #tpu.memory_space<vmem>>, %arg14: memref<2x1x32xf32, #tpu.memory_space<vmem>>, %arg15: memref<1x32xf32, #tpu.memory_space<vmem>>, %arg16: memref<1x32xf32, #tpu.memory_space<vmem>>, %arg17: memref<1x8x32xf32, #tpu.memory_space<vmem>>) attributes {dimension_semantics = [#tpu.dimension_semantics<parallel>], iteration_bounds = array<i64: 2>, scalar_prefetch = 0 : i64, scratch_operands = 0 : i64, tpu.core_type = #tpu.core_type<tc>, window_params = [{transform_indices = @transform_0, window_bounds = array<i64: 1, 8, 32>}, {pipeline_mode = #tpu.pipeline_mode<synchronous>, transform_indices = @transform_1, window_bounds = array<i64: 8, 8>}, {pipeline_mode = #tpu.pipeline_mode<synchronous>, transform_indices = @transform_2, window_bounds = array<i64: 2, 1, 32>}, {pipeline_mode = #tpu.pipeline_mode<synchronous>, transform_indices = @transform_3, window_bounds = array<i64: 2, 1, 32>}, {pipeline_mode = #tpu.pipeline_mode<synchronous>, transform_indices = @transform_4, window_bounds = array<i64: 2, 32, 96>}, {pipeline_mode = #tpu.pipeline_mode<synchronous>, transform_indices = @transform_5, window_bounds = array<i64: 2, 1, 96>}, {pipeline_mode = #tpu.pipeline_mode<synchronous>, transform_indices = @transform_6, window_bounds = array<i64: 2, 32, 32>}, {pipeline_mode = #tpu.pipeline_mode<synchronous>, transform_indices = @transform_7, window_bounds = array<i64: 2, 1, 32>}, {pipeline_mode = #tpu.pipeline_mode<synchronous>, transform_indices = @transform_8, window_bounds = array<i64: 2, 1, 32>}, {pipeline_mode = #tpu.pipeline_mode<synchronous>, transform_indices = @transform_9, window_bounds = array<i64: 2, 1, 32>}, {pipeline_mode = #tpu.pipeline_mode<synchronous>, transform_indices = @transform_10, window_bounds = array<i64: 2, 32, 64>}, {pipeline_mode = #tpu.pipeline_mode<synchronous>, transform_indices = @transform_11, window_bounds = array<i64: 2, 1, 64>}, {pipeline_mode = #tpu.pipeline_mode<synchronous>, transform_indices = @transform_12, window_bounds = array<i64: 2, 64, 32>}, {pipeline_mode = #tpu.pipeline_mode<synchronous>, transform_indices = @transform_13, window_bounds = array<i64: 2, 1, 32>}, {pipeline_mode = #tpu.pipeline_mode<synchronous>, transform_indices = @transform_14, window_bounds = array<i64: 1, 32>}, {pipeline_mode = #tpu.pipeline_mode<synchronous>, transform_indices = @transform_15, window_bounds = array<i64: 1, 32>}, {transform_indices = @transform_16, window_bounds = array<i64: 1, 8, 32>}]} {
    %c0 = arith.constant 0 : index
    %c0_0 = arith.constant 0 : index
    %c0_1 = arith.constant 0 : index
    %0 = vector.load %arg1[%c0, %c0_0, %c0_1] : memref<1x8x32xf32, #tpu.memory_space<vmem>>, vector<1x8x32xf32>
    %1 = vector.shape_cast %0 : vector<1x8x32xf32> to vector<8x32xf32>
    %c0_2 = arith.constant 0 : index
    %c0_3 = arith.constant 0 : index
    %c0_4 = arith.constant 0 : index
    %2 = vector.load %arg17[%c0_2, %c0_3, %c0_4] : memref<1x8x32xf32, #tpu.memory_space<vmem>>, vector<1x8x32xf32>
    %3 = vector.shape_cast %2 : vector<1x8x32xf32> to vector<8x32xf32>
    %4 = vector.shape_cast %1 : vector<8x32xf32> to vector<1x8x32xf32>
    tpu.vector_store %arg17[%c0_2, %c0_3, %c0_4], %4 {strides = array<i32>} : memref<1x8x32xf32, #tpu.memory_space<vmem>>, vector<1x8x32xf32>,
    %c0_5 = arith.constant 0 : index
    %c0_6 = arith.constant 0 : index
    %5 = vector.load %arg2[%c0_5, %c0_6] : memref<8x8xf32, #tpu.memory_space<vmem>>, vector<8x8xf32>
    %6 = vector.shape_cast %5 : vector<8x8xf32> to vector<1x8x8xf32>
    %7 = vector.shape_cast %6 : vector<1x8x8xf32> to vector<1x8x8xf32>
    %8 = vector.broadcast %7 : vector<1x8x8xf32> to vector<4x8x8xf32>
    %c0_i32 = arith.constant 0 : i32
    %c2_i32 = arith.constant 2 : i32
    %9 = arith.addi %c0_i32, %c2_i32 : i32
    %c1_i32 = arith.constant 1 : i32
    scf.for %arg18 = %c0_i32 to %9 step %c1_i32  : i32 {
      %c1_i32_22 = arith.constant 1 : i32
      %39 = arith.muli %arg18, %c1_i32_22 : i32
      %c0_i32_23 = arith.constant 0 : i32
      %40 = arith.addi %c0_i32_23, %39 : i32
      %c0_24 = arith.constant 0 : index
      %c0_25 = arith.constant 0 : index
      %c0_26 = arith.constant 0 : index
      %41 = vector.load %arg17[%c0_24, %c0_25, %c0_26] : memref<1x8x32xf32, #tpu.memory_space<vmem>>, vector<1x8x32xf32>
      %42 = vector.shape_cast %41 : vector<1x8x32xf32> to vector<8x32xf32>
      %43 = arith.index_cast %40 : i32 to index
      %c0_27 = arith.constant 0 : index
      %c0_28 = arith.constant 0 : index
      %44 = vector.load %arg3[%43, %c0_27, %c0_28] : memref<2x1x32xf32, #tpu.memory_space<vmem>>, vector<1x1x32xf32>
      %45 = vector.shape_cast %44 : vector<1x1x32xf32> to vector<1x32xf32>
      %46 = arith.index_cast %40 : i32 to index
      %c0_29 = arith.constant 0 : index
      %c0_30 = arith.constant 0 : index
      %47 = vector.load %arg4[%46, %c0_29, %c0_30] : memref<2x1x32xf32, #tpu.memory_space<vmem>>, vector<1x1x32xf32>
      %48 = vector.shape_cast %47 : vector<1x1x32xf32> to vector<1x32xf32>
      %cst_31 = arith.constant dense<0.000000e+00> : vector<8xf32>
      %49 = vector.multi_reduction <add>, %42, %cst_31 [1] : vector<8x32xf32> to vector<8xf32>
      %50 = vector.shape_cast %49 : vector<8xf32> to vector<8x1xf32>
      %cst_32 = arith.constant 3.200000e+01 : f32
      %51 = vector.broadcast %cst_32 : f32 to vector<8x1xf32>
      %52 = arith.divf %50, %51 : vector<8x1xf32>
      %53 = vector.broadcast %52 : vector<8x1xf32> to vector<8x32xf32>
      %54 = arith.subf %42, %53 : vector<8x32xf32>
      %55 = arith.mulf %54, %54 : vector<8x32xf32>
      %cst_33 = arith.constant dense<0.000000e+00> : vector<8xf32>
      %56 = vector.multi_reduction <add>, %55, %cst_33 [1] : vector<8x32xf32> to vector<8xf32>
      %57 = vector.shape_cast %56 : vector<8xf32> to vector<8x1xf32>
      %cst_34 = arith.constant 3.200000e+01 : f32
      %58 = vector.broadcast %cst_34 : f32 to vector<8x1xf32>
      %59 = arith.divf %57, %58 : vector<8x1xf32>
      %60 = vector.broadcast %52 : vector<8x1xf32> to vector<8x32xf32>
      %61 = arith.subf %42, %60 : vector<8x32xf32>
      %cst_35 = arith.constant 9.99999974E-6 : f32
      %62 = vector.broadcast %cst_35 : f32 to vector<8x1xf32>
      %63 = arith.addf %59, %62 : vector<8x1xf32>
      %64 = math.rsqrt %63 : vector<8x1xf32>
      %65 = vector.broadcast %64 : vector<8x1xf32> to vector<8x32xf32>
      %66 = arith.mulf %61, %65 : vector<8x32xf32>
      %67 = vector.broadcast %45 : vector<1x32xf32> to vector<8x32xf32>
      %68 = arith.mulf %66, %67 : vector<8x32xf32>
      %69 = vector.broadcast %48 : vector<1x32xf32> to vector<8x32xf32>
      %70 = arith.addf %68, %69 : vector<8x32xf32>
      %71 = arith.index_cast %40 : i32 to index
      %c0_36 = arith.constant 0 : index
      %c0_37 = arith.constant 0 : index
      %72 = vector.load %arg5[%71, %c0_36, %c0_37] : memref<2x32x96xf32, #tpu.memory_space<vmem>>, vector<1x32x96xf32>
      %73 = vector.shape_cast %72 : vector<1x32x96xf32> to vector<32x96xf32>
      %cst_38 = arith.constant dense<0.000000e+00> : vector<8x96xf32>
      %74 = tpu.matmul %70, %73, %cst_38 {dimension_numbers = #tpu.dot_dimension_numbers<[1], [0], [0], [1], [0, 0, 1, 1], [], []>} : vector<8x32xf32>, vector<32x96xf32>, vector<8x96xf32> -> vector<8x96xf32>
      %75 = arith.index_cast %40 : i32 to index
      %c0_39 = arith.constant 0 : index
      %c0_40 = arith.constant 0 : index
      %76 = vector.load %arg6[%75, %c0_39, %c0_40] : memref<2x1x96xf32, #tpu.memory_space<vmem>>, vector<1x1x96xf32>
      %77 = vector.shape_cast %76 : vector<1x1x96xf32> to vector<1x96xf32>
      %78 = vector.broadcast %77 : vector<1x96xf32> to vector<8x96xf32>
      %79 = arith.addf %74, %78 : vector<8x96xf32>
      %80 = vector.extract_strided_slice %79 {offsets = [0, 0], sizes = [8, 8], strides = [1, 1]} : vector<8x96xf32> to vector<8x8xf32>
      %81 = vector.extract_strided_slice %79 {offsets = [0, 8], sizes = [8, 8], strides = [1, 1]} : vector<8x96xf32> to vector<8x8xf32>
      %82 = vector.extract_strided_slice %79 {offsets = [0, 16], sizes = [8, 8], strides = [1, 1]} : vector<8x96xf32> to vector<8x8xf32>
      %83 = vector.extract_strided_slice %79 {offsets = [0, 24], sizes = [8, 8], strides = [1, 1]} : vector<8x96xf32> to vector<8x8xf32>
      %84 = vector.shape_cast %80 : vector<8x8xf32> to vector<1x8x8xf32>
      %85 = vector.shape_cast %81 : vector<8x8xf32> to vector<1x8x8xf32>
      %86 = vector.shape_cast %82 : vector<8x8xf32> to vector<1x8x8xf32>
      %87 = vector.shape_cast %83 : vector<8x8xf32> to vector<1x8x8xf32>
      %88 = tpu.concatenate %84, %85, %86, %87 in 0 : vector<1x8x8xf32>, vector<1x8x8xf32>, vector<1x8x8xf32>, vector<1x8x8xf32> -> vector<4x8x8xf32>
      %89 = vector.extract_strided_slice %79 {offsets = [0, 32], sizes = [8, 8], strides = [1, 1]} : vector<8x96xf32> to vector<8x8xf32>
      %90 = vector.extract_strided_slice %79 {offsets = [0, 40], sizes = [8, 8], strides = [1, 1]} : vector<8x96xf32> to vector<8x8xf32>
      %91 = vector.extract_strided_slice %79 {offsets = [0, 48], sizes = [8, 8], strides = [1, 1]} : vector<8x96xf32> to vector<8x8xf32>
      %92 = vector.extract_strided_slice %79 {offsets = [0, 56], sizes = [8, 8], strides = [1, 1]} : vector<8x96xf32> to vector<8x8xf32>
      %93 = vector.shape_cast %89 : vector<8x8xf32> to vector<1x8x8xf32>
      %94 = vector.shape_cast %90 : vector<8x8xf32> to vector<1x8x8xf32>
      %95 = vector.shape_cast %91 : vector<8x8xf32> to vector<1x8x8xf32>
      %96 = vector.shape_cast %92 : vector<8x8xf32> to vector<1x8x8xf32>
      %97 = tpu.concatenate %93, %94, %95, %96 in 0 : vector<1x8x8xf32>, vector<1x8x8xf32>, vector<1x8x8xf32>, vector<1x8x8xf32> -> vector<4x8x8xf32>
      %98 = vector.extract_strided_slice %79 {offsets = [0, 64], sizes = [8, 8], strides = [1, 1]} : vector<8x96xf32> to vector<8x8xf32>
      %99 = vector.extract_strided_slice %79 {offsets = [0, 72], sizes = [8, 8], strides = [1, 1]} : vector<8x96xf32> to vector<8x8xf32>
      %100 = vector.extract_strided_slice %79 {offsets = [0, 80], sizes = [8, 8], strides = [1, 1]} : vector<8x96xf32> to vector<8x8xf32>
      %101 = vector.extract_strided_slice %79 {offsets = [0, 88], sizes = [8, 8], strides = [1, 1]} : vector<8x96xf32> to vector<8x8xf32>
      %102 = vector.shape_cast %98 : vector<8x8xf32> to vector<1x8x8xf32>
      %103 = vector.shape_cast %99 : vector<8x8xf32> to vector<1x8x8xf32>
      %104 = vector.shape_cast %100 : vector<8x8xf32> to vector<1x8x8xf32>
      %105 = vector.shape_cast %101 : vector<8x8xf32> to vector<1x8x8xf32>
      %106 = tpu.concatenate %102, %103, %104, %105 in 0 : vector<1x8x8xf32>, vector<1x8x8xf32>, vector<1x8x8xf32>, vector<1x8x8xf32> -> vector<4x8x8xf32>
      "tpu.trace_start"() <{level = 10 : i32, message = "hqd,hkd->hqk"}> : () -> ()
      %cst_41 = arith.constant dense<0.000000e+00> : vector<4x8x8xf32>
      %107 = tpu.matmul %88, %97, %cst_41 {dimension_numbers = #tpu.dot_dimension_numbers<[2], [2], [1], [1], [0, 0, 0, 1, 1, 1], [0], [0]>} : vector<4x8x8xf32>, vector<4x8x8xf32>, vector<4x8x8xf32> -> vector<4x8x8xf32>
      "tpu.trace_stop"() : () -> ()
      %108 = arith.addf %107, %8 : vector<4x8x8xf32>
      %cst_42 = arith.constant dense<0xFF800000> : vector<4x8xf32>
      %109 = vector.multi_reduction <maximumf>, %108, %cst_42 [2] : vector<4x8x8xf32> to vector<4x8xf32>
      %110 = vector.shape_cast %109 : vector<4x8xf32> to vector<4x8x1xf32>
      %111 = vector.broadcast %110 : vector<4x8x1xf32> to vector<4x8x8xf32>
      %112 = arith.subf %108, %111 : vector<4x8x8xf32>
      %113 = math.exp %112 : vector<4x8x8xf32>
      %cst_43 = arith.constant dense<0.000000e+00> : vector<4x8xf32>
      %114 = vector.multi_reduction <add>, %113, %cst_43 [2] : vector<4x8x8xf32> to vector<4x8xf32>
      %115 = vector.shape_cast %114 : vector<4x8xf32> to vector<4x8x1xf32>
      %116 = vector.broadcast %115 : vector<4x8x1xf32> to vector<4x8x8xf32>
      %117 = arith.divf %113, %116 : vector<4x8x8xf32>
      "tpu.trace_start"() <{level = 10 : i32, message = "hqk,hkd->hqd"}> : () -> ()
      %cst_44 = arith.constant dense<0.000000e+00> : vector<4x8x8xf32>
      %118 = tpu.matmul %117, %106, %cst_44 {dimension_numbers = #tpu.dot_dimension_numbers<[2], [1], [1], [2], [0, 0, 0, 1, 1, 2], [0], [0]>} : vector<4x8x8xf32>, vector<4x8x8xf32>, vector<4x8x8xf32> -> vector<4x8x8xf32>
      "tpu.trace_stop"() : () -> ()
      %119 = vector.extract_strided_slice %118 {offsets = [0, 0, 0], sizes = [1, 8, 8], strides = [1, 1, 1]} : vector<4x8x8xf32> to vector<1x8x8xf32>
      %120 = vector.shape_cast %119 : vector<1x8x8xf32> to vector<8x8xf32>
      %121 = vector.extract_strided_slice %118 {offsets = [1, 0, 0], sizes = [1, 8, 8], strides = [1, 1, 1]} : vector<4x8x8xf32> to vector<1x8x8xf32>
      %122 = vector.shape_cast %121 : vector<1x8x8xf32> to vector<8x8xf32>
      %123 = vector.extract_strided_slice %118 {offsets = [2, 0, 0], sizes = [1, 8, 8], strides = [1, 1, 1]} : vector<4x8x8xf32> to vector<1x8x8xf32>
      %124 = vector.shape_cast %123 : vector<1x8x8xf32> to vector<8x8xf32>
      %125 = vector.extract_strided_slice %118 {offsets = [3, 0, 0], sizes = [1, 8, 8], strides = [1, 1, 1]} : vector<4x8x8xf32> to vector<1x8x8xf32>
      %126 = vector.shape_cast %125 : vector<1x8x8xf32> to vector<8x8xf32>
      %127 = tpu.concatenate %120, %122, %124, %126 in 1 : vector<8x8xf32>, vector<8x8xf32>, vector<8x8xf32>, vector<8x8xf32> -> vector<8x32xf32>
      %128 = arith.index_cast %40 : i32 to index
      %c0_45 = arith.constant 0 : index
      %c0_46 = arith.constant 0 : index
      %129 = vector.load %arg7[%128, %c0_45, %c0_46] : memref<2x32x32xf32, #tpu.memory_space<vmem>>, vector<1x32x32xf32>
      %130 = vector.shape_cast %129 : vector<1x32x32xf32> to vector<32x32xf32>
      %cst_47 = arith.constant dense<0.000000e+00> : vector<8x32xf32>
      %131 = tpu.matmul %127, %130, %cst_47 {dimension_numbers = #tpu.dot_dimension_numbers<[1], [0], [0], [1], [0, 0, 1, 1], [], []>} : vector<8x32xf32>, vector<32x32xf32>, vector<8x32xf32> -> vector<8x32xf32>
      %132 = arith.addf %42, %131 : vector<8x32xf32>
      %133 = arith.index_cast %40 : i32 to index
      %c0_48 = arith.constant 0 : index
      %c0_49 = arith.constant 0 : index
      %134 = vector.load %arg8[%133, %c0_48, %c0_49] : memref<2x1x32xf32, #tpu.memory_space<vmem>>, vector<1x1x32xf32>
      %135 = vector.shape_cast %134 : vector<1x1x32xf32> to vector<1x32xf32>
      %136 = vector.broadcast %135 : vector<1x32xf32> to vector<8x32xf32>
      %137 = arith.addf %132, %136 : vector<8x32xf32>
      %138 = arith.index_cast %40 : i32 to index
      %c0_50 = arith.constant 0 : index
      %c0_51 = arith.constant 0 : index
      %139 = vector.load %arg9[%138, %c0_50, %c0_51] : memref<2x1x32xf32, #tpu.memory_space<vmem>>, vector<1x1x32xf32>
      %140 = vector.shape_cast %139 : vector<1x1x32xf32> to vector<1x32xf32>
      %141 = arith.index_cast %40 : i32 to index
      %c0_52 = arith.constant 0 : index
      %c0_53 = arith.constant 0 : index
      %142 = vector.load %arg10[%141, %c0_52, %c0_53] : memref<2x1x32xf32, #tpu.memory_space<vmem>>, vector<1x1x32xf32>
      %143 = vector.shape_cast %142 : vector<1x1x32xf32> to vector<1x32xf32>
      %cst_54 = arith.constant dense<0.000000e+00> : vector<8xf32>
      %144 = vector.multi_reduction <add>, %137, %cst_54 [1] : vector<8x32xf32> to vector<8xf32>
      %145 = vector.shape_cast %144 : vector<8xf32> to vector<8x1xf32>
      %cst_55 = arith.constant 3.200000e+01 : f32
      %146 = vector.broadcast %cst_55 : f32 to vector<8x1xf32>
      %147 = arith.divf %145, %146 : vector<8x1xf32>
      %148 = vector.broadcast %147 : vector<8x1xf32> to vector<8x32xf32>
      %149 = arith.subf %137, %148 : vector<8x32xf32>
      %150 = arith.mulf %149, %149 : vector<8x32xf32>
      %cst_56 = arith.constant dense<0.000000e+00> : vector<8xf32>
      %151 = vector.multi_reduction <add>, %150, %cst_56 [1] : vector<8x32xf32> to vector<8xf32>
      %152 = vector.shape_cast %151 : vector<8xf32> to vector<8x1xf32>
      %cst_57 = arith.constant 3.200000e+01 : f32
      %153 = vector.broadcast %cst_57 : f32 to vector<8x1xf32>
      %154 = arith.divf %152, %153 : vector<8x1xf32>
      %155 = vector.broadcast %147 : vector<8x1xf32> to vector<8x32xf32>
      %156 = arith.subf %137, %155 : vector<8x32xf32>
      %cst_58 = arith.constant 9.99999974E-6 : f32
      %157 = vector.broadcast %cst_58 : f32 to vector<8x1xf32>
      %158 = arith.addf %154, %157 : vector<8x1xf32>
      %159 = math.rsqrt %158 : vector<8x1xf32>
      %160 = vector.broadcast %159 : vector<8x1xf32> to vector<8x32xf32>
      %161 = arith.mulf %156, %160 : vector<8x32xf32>
      %162 = vector.broadcast %140 : vector<1x32xf32> to vector<8x32xf32>
      %163 = arith.mulf %161, %162 : vector<8x32xf32>
      %164 = vector.broadcast %143 : vector<1x32xf32> to vector<8x32xf32>
      %165 = arith.addf %163, %164 : vector<8x32xf32>
      %166 = arith.index_cast %40 : i32 to index
      %c0_59 = arith.constant 0 : index
      %c0_60 = arith.constant 0 : index
      %167 = vector.load %arg11[%166, %c0_59, %c0_60] : memref<2x32x64xf32, #tpu.memory_space<vmem>>, vector<1x32x64xf32>
      %168 = vector.shape_cast %167 : vector<1x32x64xf32> to vector<32x64xf32>
      %cst_61 = arith.constant dense<0.000000e+00> : vector<8x64xf32>
      %169 = tpu.matmul %165, %168, %cst_61 {dimension_numbers = #tpu.dot_dimension_numbers<[1], [0], [0], [1], [0, 0, 1, 1], [], []>} : vector<8x32xf32>, vector<32x64xf32>, vector<8x64xf32> -> vector<8x64xf32>
      %170 = arith.index_cast %40 : i32 to index
      %c0_62 = arith.constant 0 : index
      %c0_63 = arith.constant 0 : index
      %171 = vector.load %arg12[%170, %c0_62, %c0_63] : memref<2x1x64xf32, #tpu.memory_space<vmem>>, vector<1x1x64xf32>
      %172 = vector.shape_cast %171 : vector<1x1x64xf32> to vector<1x64xf32>
      %173 = vector.broadcast %172 : vector<1x64xf32> to vector<8x64xf32>
      %174 = arith.addf %169, %173 : vector<8x64xf32>
      %cst_64 = arith.constant 0.000000e+00 : f32
      %175 = vector.broadcast %cst_64 : f32 to vector<8x64xf32>
      %176 = arith.maximumf %174, %175 : vector<8x64xf32>
      %177 = arith.index_cast %40 : i32 to index
      %c0_65 = arith.constant 0 : index
      %c0_66 = arith.constant 0 : index
      %178 = vector.load %arg13[%177, %c0_65, %c0_66] : memref<2x64x32xf32, #tpu.memory_space<vmem>>, vector<1x64x32xf32>
      %179 = vector.shape_cast %178 : vector<1x64x32xf32> to vector<64x32xf32>
      %cst_67 = arith.constant dense<0.000000e+00> : vector<8x32xf32>
      %180 = tpu.matmul %176, %179, %cst_67 {dimension_numbers = #tpu.dot_dimension_numbers<[1], [0], [0], [1], [0, 0, 1, 1], [], []>} : vector<8x64xf32>, vector<64x32xf32>, vector<8x32xf32> -> vector<8x32xf32>
      %181 = arith.index_cast %40 : i32 to index
      %c0_68 = arith.constant 0 : index
      %c0_69 = arith.constant 0 : index
      %182 = vector.load %arg14[%181, %c0_68, %c0_69] : memref<2x1x32xf32, #tpu.memory_space<vmem>>, vector<1x1x32xf32>
      %183 = vector.shape_cast %182 : vector<1x1x32xf32> to vector<1x32xf32>
      %184 = vector.broadcast %183 : vector<1x32xf32> to vector<8x32xf32>
      %185 = arith.addf %180, %184 : vector<8x32xf32>
      %186 = arith.addf %137, %185 : vector<8x32xf32>
      %c0_70 = arith.constant 0 : index
      %c0_71 = arith.constant 0 : index
      %c0_72 = arith.constant 0 : index
      %187 = vector.load %arg17[%c0_70, %c0_71, %c0_72] : memref<1x8x32xf32, #tpu.memory_space<vmem>>, vector<1x8x32xf32>
      %188 = vector.shape_cast %187 : vector<1x8x32xf32> to vector<8x32xf32>
      %189 = vector.shape_cast %186 : vector<8x32xf32> to vector<1x8x32xf32>
      tpu.vector_store %arg17[%c0_70, %c0_71, %c0_72], %189 {strides = array<i32>} : memref<1x8x32xf32, #tpu.memory_space<vmem>>, vector<1x8x32xf32>,
    }
    %c2_i32_7 = arith.constant 2 : i32
    %c0_8 = arith.constant 0 : index
    %c0_9 = arith.constant 0 : index
    %c0_10 = arith.constant 0 : index
    %10 = vector.load %arg17[%c0_8, %c0_9, %c0_10] : memref<1x8x32xf32, #tpu.memory_space<vmem>>, vector<1x8x32xf32>
    %11 = vector.shape_cast %10 : vector<1x8x32xf32> to vector<8x32xf32>
    %c0_11 = arith.constant 0 : index
    %c0_12 = arith.constant 0 : index
    %12 = vector.load %arg15[%c0_11, %c0_12] : memref<1x32xf32, #tpu.memory_space<vmem>>, vector<1x32xf32>
    %c0_13 = arith.constant 0 : index
    %c0_14 = arith.constant 0 : index
    %13 = vector.load %arg16[%c0_13, %c0_14] : memref<1x32xf32, #tpu.memory_space<vmem>>, vector<1x32xf32>
    %cst = arith.constant dense<0.000000e+00> : vector<8xf32>
    %14 = vector.multi_reduction <add>, %11, %cst [1] : vector<8x32xf32> to vector<8xf32>
    %15 = vector.shape_cast %14 : vector<8xf32> to vector<8x1xf32>
    %cst_15 = arith.constant 3.200000e+01 : f32
    %16 = vector.broadcast %cst_15 : f32 to vector<8x1xf32>
    %17 = arith.divf %15, %16 : vector<8x1xf32>
    %18 = vector.broadcast %17 : vector<8x1xf32> to vector<8x32xf32>
    %19 = arith.subf %11, %18 : vector<8x32xf32>
    %20 = arith.mulf %19, %19 : vector<8x32xf32>
    %cst_16 = arith.constant dense<0.000000e+00> : vector<8xf32>
    %21 = vector.multi_reduction <add>, %20, %cst_16 [1] : vector<8x32xf32> to vector<8xf32>
    %22 = vector.shape_cast %21 : vector<8xf32> to vector<8x1xf32>
    %cst_17 = arith.constant 3.200000e+01 : f32
    %23 = vector.broadcast %cst_17 : f32 to vector<8x1xf32>
    %24 = arith.divf %22, %23 : vector<8x1xf32>
    %25 = vector.broadcast %17 : vector<8x1xf32> to vector<8x32xf32>
    %26 = arith.subf %11, %25 : vector<8x32xf32>
    %cst_18 = arith.constant 9.99999974E-6 : f32
    %27 = vector.broadcast %cst_18 : f32 to vector<8x1xf32>
    %28 = arith.addf %24, %27 : vector<8x1xf32>
    %29 = math.rsqrt %28 : vector<8x1xf32>
    %30 = vector.broadcast %29 : vector<8x1xf32> to vector<8x32xf32>
    %31 = arith.mulf %26, %30 : vector<8x32xf32>
    %32 = vector.broadcast %12 : vector<1x32xf32> to vector<8x32xf32>
    %33 = arith.mulf %31, %32 : vector<8x32xf32>
    %34 = vector.broadcast %13 : vector<1x32xf32> to vector<8x32xf32>
    %35 = arith.addf %33, %34 : vector<8x32xf32>
    %c0_19 = arith.constant 0 : index
    %c0_20 = arith.constant 0 : index
    %c0_21 = arith.constant 0 : index
    %36 = vector.load %arg17[%c0_19, %c0_20, %c0_21] : memref<1x8x32xf32, #tpu.memory_space<vmem>>, vector<1x8x32xf32>
    %37 = vector.shape_cast %36 : vector<1x8x32xf32> to vector<8x32xf32>
    %38 = vector.shape_cast %35 : vector<8x32xf32> to vector<1x8x32xf32>
    tpu.vector_store %arg17[%c0_19, %c0_20, %c0_21], %38 {strides = array<i32>} : memref<1x8x32xf32, #tpu.memory_space<vmem>>, vector<1x8x32xf32>,
    return
  }
  func.func @transform_0(%arg0: i32) -> (i32, i32, i32) {
    %c0_i32 = arith.constant 0 : i32
    %c0_i32_0 = arith.constant 0 : i32
    %c0_i32_1 = arith.constant 0 : i32
    return %arg0, %c0_i32, %c0_i32_0 : i32, i32, i32
  }
  func.func @transform_1(%arg0: i32) -> (i32, i32) {
    %c0_i32 = arith.constant 0 : i32
    %c0_i32_0 = arith.constant 0 : i32
    %c0_i32_1 = arith.constant 0 : i32
    return %c0_i32, %c0_i32_0 : i32, i32
  }
  func.func @transform_2(%arg0: i32) -> (i32, i32, i32) {
    %c0_i32 = arith.constant 0 : i32
    %c0_i32_0 = arith.constant 0 : i32
    %c0_i32_1 = arith.constant 0 : i32
    %c0_i32_2 = arith.constant 0 : i32
    return %c0_i32, %c0_i32_0, %c0_i32_1 : i32, i32, i32
  }
  func.func @transform_3(%arg0: i32) -> (i32, i32, i32) {
    %c0_i32 = arith.constant 0 : i32
    %c0_i32_0 = arith.constant 0 : i32
    %c0_i32_1 = arith.constant 0 : i32
    %c0_i32_2 = arith.constant 0 : i32
    return %c0_i32, %c0_i32_0, %c0_i32_1 : i32, i32, i32
  }
  func.func @transform_4(%arg0: i32) -> (i32, i32, i32) {
    %c0_i32 = arith.constant 0 : i32
    %c0_i32_0 = arith.constant 0 : i32
    %c0_i32_1 = arith.constant 0 : i32
    %c0_i32_2 = arith.constant 0 : i32
    return %c0_i32, %c0_i32_0, %c0_i32_1 : i32, i32, i32
  }
  func.func @transform_5(%arg0: i32) -> (i32, i32, i32) {
    %c0_i32 = arith.constant 0 : i32
    %c0_i32_0 = arith.constant 0 : i32
    %c0_i32_1 = arith.constant 0 : i32
    %c0_i32_2 = arith.constant 0 : i32
    return %c0_i32, %c0_i32_0, %c0_i32_1 : i32, i32, i32
  }
  func.func @transform_6(%arg0: i32) -> (i32, i32, i32) {
    %c0_i32 = arith.constant 0 : i32
    %c0_i32_0 = arith.constant 0 : i32
    %c0_i32_1 = arith.constant 0 : i32
    %c0_i32_2 = arith.constant 0 : i32
    return %c0_i32, %c0_i32_0, %c0_i32_1 : i32, i32, i32
  }
  func.func @transform_7(%arg0: i32) -> (i32, i32, i32) {
    %c0_i32 = arith.constant 0 : i32
    %c0_i32_0 = arith.constant 0 : i32
    %c0_i32_1 = arith.constant 0 : i32
    %c0_i32_2 = arith.constant 0 : i32
    return %c0_i32, %c0_i32_0, %c0_i32_1 : i32, i32, i32
  }
  func.func @transform_8(%arg0: i32) -> (i32, i32, i32) {
    %c0_i32 = arith.constant 0 : i32
    %c0_i32_0 = arith.constant 0 : i32
    %c0_i32_1 = arith.constant 0 : i32
    %c0_i32_2 = arith.constant 0 : i32
    return %c0_i32, %c0_i32_0, %c0_i32_1 : i32, i32, i32
  }
  func.func @transform_9(%arg0: i32) -> (i32, i32, i32) {
    %c0_i32 = arith.constant 0 : i32
    %c0_i32_0 = arith.constant 0 : i32
    %c0_i32_1 = arith.constant 0 : i32
    %c0_i32_2 = arith.constant 0 : i32
    return %c0_i32, %c0_i32_0, %c0_i32_1 : i32, i32, i32
  }
  func.func @transform_10(%arg0: i32) -> (i32, i32, i32) {
    %c0_i32 = arith.constant 0 : i32
    %c0_i32_0 = arith.constant 0 : i32
    %c0_i32_1 = arith.constant 0 : i32
    %c0_i32_2 = arith.constant 0 : i32
    return %c0_i32, %c0_i32_0, %c0_i32_1 : i32, i32, i32
  }
  func.func @transform_11(%arg0: i32) -> (i32, i32, i32) {
    %c0_i32 = arith.constant 0 : i32
    %c0_i32_0 = arith.constant 0 : i32
    %c0_i32_1 = arith.constant 0 : i32
    %c0_i32_2 = arith.constant 0 : i32
    return %c0_i32, %c0_i32_0, %c0_i32_1 : i32, i32, i32
  }
  func.func @transform_12(%arg0: i32) -> (i32, i32, i32) {
    %c0_i32 = arith.constant 0 : i32
    %c0_i32_0 = arith.constant 0 : i32
    %c0_i32_1 = arith.constant 0 : i32
    %c0_i32_2 = arith.constant 0 : i32
    return %c0_i32, %c0_i32_0, %c0_i32_1 : i32, i32, i32
  }
  func.func @transform_13(%arg0: i32) -> (i32, i32, i32) {
    %c0_i32 = arith.constant 0 : i32
    %c0_i32_0 = arith.constant 0 : i32
    %c0_i32_1 = arith.constant 0 : i32
    %c0_i32_2 = arith.constant 0 : i32
    return %c0_i32, %c0_i32_0, %c0_i32_1 : i32, i32, i32
  }
  func.func @transform_14(%arg0: i32) -> (i32, i32) {
    %c0_i32 = arith.constant 0 : i32
    %c0_i32_0 = arith.constant 0 : i32
    %c0_i32_1 = arith.constant 0 : i32
    return %c0_i32, %c0_i32_0 : i32, i32
  }
  func.func @transform_15(%arg0: i32) -> (i32, i32) {
    %c0_i32 = arith.constant 0 : i32
    %c0_i32_0 = arith.constant 0 : i32
    %c0_i32_1 = arith.constant 0 : i32
    return %c0_i32, %c0_i32_0 : i32, i32
  }
  func.func @transform_16(%arg0: i32) -> (i32, i32, i32) {
    %c0_i32 = arith.constant 0 : i32
    %c0_i32_0 = arith.constant 0 : i32
    %c0_i32_1 = arith.constant 0 : i32
    return %arg0, %c0_i32, %c0_i32_0 : i32, i32, i32
  }
}

</mosaic_0001>

<llo_original>
// kernel: tpu_custom_call.1
$region0: #{tpu_custom_call.1}
  #allocation0 [shape = 'u32[]', space=smem, size = 0x4, offset = 0x4, fixed_abs, tag = 'smem constant byte address 0x4 - core index']
  #allocation1 [shape = 'u32[144,128]{1,0:T(1,128)}', space=vmem, size = 0x12000, scoped, tag = 'internal scratch']
  %s0 = inlined_call_operand.hbm [shape: f32[2,8,32], index: 0, kind: input, shape index: {}]
  %s1 = inlined_call_operand.hbm [shape: f32[8,8], index: 1, kind: input, shape index: {}]
  %s2 = inlined_call_operand.vmem [shape: f32[2,1,32], index: 2, kind: input, shape index: {}]
  %s3 = inlined_call_operand.vmem [shape: f32[2,1,32], index: 3, kind: input, shape index: {}]
  %s4 = inlined_call_operand.vmem [shape: f32[2,32,96], index: 4, kind: input, shape index: {}]
  %s5 = inlined_call_operand.vmem [shape: f32[2,1,96], index: 5, kind: input, shape index: {}]
  %s6 = inlined_call_operand.vmem [shape: f32[2,32,32], index: 6, kind: input, shape index: {}]
  %s7 = inlined_call_operand.vmem [shape: f32[2,1,32], index: 7, kind: input, shape index: {}]
  %s8 = inlined_call_operand.vmem [shape: f32[2,1,32], index: 8, kind: input, shape index: {}]
  %s9 = inlined_call_operand.vmem [shape: f32[2,1,32], index: 9, kind: input, shape index: {}]
  %s10 = inlined_call_operand.vmem [shape: f32[2,32,64], index: 10, kind: input, shape index: {}]
  %s11 = inlined_call_operand.vmem [shape: f32[2,1,64], index: 11, kind: input, shape index: {}]
  %s12 = inlined_call_operand.vmem [shape: f32[2,64,32], index: 12, kind: input, shape index: {}]
  %s13 = inlined_call_operand.vmem [shape: f32[2,1,32], index: 13, kind: input, shape index: {}]
  %s14 = inlined_call_operand.vmem [shape: f32[1,32], index: 14, kind: input, shape index: {}]
  %s15 = inlined_call_operand.vmem [shape: f32[1,32], index: 15, kind: input, shape index: {}]
  %s16 = inlined_call_operand.hbm [shape: f32[2,8,32], index: 16, kind: output, shape index: {}]
  %s17 = sld [smem:[#allocation0]]
  $region112: #{tpu_custom_call.1} parent=0
    _
  %s19 = ssub.s32 1, %s17
  %s20 = scalar_select 0, %s19, %s17
  $region1: #{tpu_custom_call.1} parent=0
    #allocation2 [shape = 'u8[8192]{0}', space=vmem, size = 0x2000, scoped, tag = 'input window, operand 0']
    #allocation3 [shape = 's32[2]{0}', space=sflag, size = 0x8, scoped, tag = 'scoped memory for tpu_custom_call.1']
    #allocation4 [shape = 's32[2]{0}', space=sflag, size = 0x8, scoped, tag = 'scoped memory for tpu_custom_call.1']
    #allocation5 [shape = 'u8[4096]{0}', space=vmem, size = 0x1000, scoped, tag = 'input window, operand 1, single buffered']
    #allocation6 [shape = 's32[1]{0}', space=sflag, size = 0x4, scoped, tag = 'scoped memory for tpu_custom_call.1']
    #allocation7 [shape = 'u8[8192]{0}', space=vmem, size = 0x2000, scoped, tag = 'output window, operand 0']
    %21 = vsyncpa [#allocation3], 0
    %s22 = scalar_lea.sflag [#allocation3], 1
    %23 = vsyncpa %s22, 0
    %24 = vsyncpa [#allocation6], 0
    %25 = vsyncpa [#allocation4], 0
    %s26 = scalar_lea.sflag [#allocation4], 1
    %27 = vsyncpa %s26, 0
    loop: start=0, step=1, limit=4
    $region2: #{tpu_custom_call.1} parent=1 // loop_pre_header
      _
    $region3: #{tpu_custom_call.1} parent=1 // loop_header
      %s29 = sphi 0, %s33
      %p30 = scmp.ge.s32.totalorder %s29, 4
      %s39 = sphi 0, %s41
      %s42 = sphi 0, %s39
      %s43 = sphi 0, %s42
      %s59 = sphi 0, %s43
      %s63 = sphi 0, %s63
      %s65 = sphi 0, %s63
      %s66 = sphi 0, %s65
      %s80 = sphi 0, %s66
      %s84 = sphi 0, %s84
      %s86 = sphi 0, %s84
      %s87 = sphi 0, %s86
      %s101 = sphi 0, %s87
      %s105 = sphi 0, %s105
      %s107 = sphi 0, %s105
      %s108 = sphi 0, %s107
      %s122 = sphi 0, %s108
      %s126 = sphi 0, %s126
      %s128 = sphi 0, %s126
      %s129 = sphi 0, %s128
      %s143 = sphi 0, %s129
      %s147 = sphi 0, %s147
      %s149 = sphi 0, %s147
      %s150 = sphi 0, %s149
      %s164 = sphi 0, %s150
      %s168 = sphi 0, %s168
      %s170 = sphi 0, %s168
      %s171 = sphi 0, %s170
      %s185 = sphi 0, %s171
      %s189 = sphi 0, %s189
      %s191 = sphi 0, %s189
      %s192 = sphi 0, %s191
      %s206 = sphi 0, %s192
      %s210 = sphi 0, %s210
      %s212 = sphi 0, %s210
      %s213 = sphi 0, %s212
      %s227 = sphi 0, %s213
      %s231 = sphi 0, %s231
      %s233 = sphi 0, %s231
      %s234 = sphi 0, %s233
      %s248 = sphi 0, %s234
      %s252 = sphi 0, %s252
      %s254 = sphi 0, %s252
      %s255 = sphi 0, %s254
      %s269 = sphi 0, %s255
      %s273 = sphi 0, %s273
      %s275 = sphi 0, %s273
      %s276 = sphi 0, %s275
      %s290 = sphi 0, %s276
      %s294 = sphi 0, %s294
      %s296 = sphi 0, %s294
      %s297 = sphi 0, %s296
      %s311 = sphi 0, %s297
      %s315 = sphi 0, %s315
      %s317 = sphi 0, %s315
      %s318 = sphi 0, %s317
      %s332 = sphi 0, %s318
      %s336 = sphi 0, %s336
      %s338 = sphi 0, %s336
      %s339 = sphi 0, %s338
      %s353 = sphi 0, %s339
      %s357 = sphi 0, %s357
      %s359 = sphi 0, %s357
      %s360 = sphi 0, %s359
      %s374 = sphi 0, %s360
      %s380 = sphi 0, %s382
      %s383 = sphi 0, %s380
      %s384 = sphi 0, %s383
      %s400 = sphi 0, %s384
    $region4: #{tpu_custom_call.1} parent=1 // loop_header_branch
      %32 = sbr.rel (%p30) target = $region8
    $region5: #{tpu_custom_call.1} parent=1 // loop_body
      %s34 = ssub.s32 %s29, 1
      %s35 = ssub.s32 %s29, 2
      %s36 = sadd.s32 %s29, 1
      %s37 = ssub.s32 %s29, %s36
      %p38 = scmp.eq.s32.totalorder %s37, 0
      %s40 = sadd.s32 %s39, 1
      %s41 = scalar_select %p38, %s39, %s40
      %p44 = pneg %p38
      %p45 = scmp.eq.s32.totalorder %s29, 1
      %p46 = por %p44, %p45
      %p47 = scmp.ne.s32.totalorder %s39, %s42
      %p48 = scmp.eq.s32.totalorder %s29, 0
      %p49 = por %p47, %p48
      %p50 = scmp.ne.s32.totalorder %s39, %s42
      %p51 = scmp.eq.s32.totalorder %s34, 1
      %p52 = por %p50, %p51
      %p53 = scmp.ne.s32.totalorder %s42, %s43
      %p54 = scmp.eq.s32.totalorder %s34, 0
      %p55 = por %p53, %p54
      %p56 = scmp.ne.s32.totalorder %s42, %s43
      %p57 = scmp.eq.s32.totalorder %s35, 1
      %p58 = por %p56, %p57
      %p60 = scmp.ne.s32.totalorder %s43, %s59
      %p61 = scmp.eq.s32.totalorder %s35, 0
      %p62 = por %p60, %p61
      %s64 = sadd.s32 %s63, 1
      %p67 = scmp.eq.s32.totalorder %s29, 1
      %p68 = scmp.ne.s32.totalorder %s63, %s65
      %p69 = scmp.eq.s32.totalorder %s29, 0
      %p70 = por %p68, %p69
      %p71 = scmp.ne.s32.totalorder %s63, %s65
      %p72 = scmp.eq.s32.totalorder %s34, 1
      %p73 = por %p71, %p72
      %p74 = scmp.ne.s32.totalorder %s65, %s66
      %p75 = scmp.eq.s32.totalorder %s34, 0
      %p76 = por %p74, %p75
      %p77 = scmp.ne.s32.totalorder %s65, %s66
      %p78 = scmp.eq.s32.totalorder %s35, 1
      %p79 = por %p77, %p78
      %p81 = scmp.ne.s32.totalorder %s66, %s80
      %p82 = scmp.eq.s32.totalorder %s35, 0
      %p83 = por %p81, %p82
      %s85 = sadd.s32 %s84, 1
      %p88 = scmp.eq.s32.totalorder %s29, 1
      %p89 = scmp.ne.s32.totalorder %s84, %s86
      %p90 = scmp.eq.s32.totalorder %s29, 0
      %p91 = por %p89, %p90
      %p92 = scmp.ne.s32.totalorder %s84, %s86
      %p93 = scmp.eq.s32.totalorder %s34, 1
      %p94 = por %p92, %p93
      %p95 = scmp.ne.s32.totalorder %s86, %s87
      %p96 = scmp.eq.s32.totalorder %s34, 0
      %p97 = por %p95, %p96
      %p98 = scmp.ne.s32.totalorder %s86, %s87
      %p99 = scmp.eq.s32.totalorder %s35, 1
      %p100 = por %p98, %p99
      %p102 = scmp.ne.s32.totalorder %s87, %s101
      %p103 = scmp.eq.s32.totalorder %s35, 0
      %p104 = por %p102, %p103
      %s106 = sadd.s32 %s105, 1
      %p109 = scmp.eq.s32.totalorder %s29, 1
      %p110 = scmp.ne.s32.totalorder %s105, %s107
      %p111 = scmp.eq.s32.totalorder %s29, 0
      %p112 = por %p110, %p111
      %p113 = scmp.ne.s32.totalorder %s105, %s107
      %p114 = scmp.eq.s32.totalorder %s34, 1
      %p115 = por %p113, %p114
      %p116 = scmp.ne.s32.totalorder %s107, %s108
      %p117 = scmp.eq.s32.totalorder %s34, 0
      %p118 = por %p116, %p117
      %p119 = scmp.ne.s32.totalorder %s107, %s108
      %p120 = scmp.eq.s32.totalorder %s35, 1
      %p121 = por %p119, %p120
      %p123 = scmp.ne.s32.totalorder %s108, %s122
      %p124 = scmp.eq.s32.totalorder %s35, 0
      %p125 = por %p123, %p124
      %s127 = sadd.s32 %s126, 1
      %p130 = scmp.eq.s32.totalorder %s29, 1
      %p131 = scmp.ne.s32.totalorder %s126, %s128
      %p132 = scmp.eq.s32.totalorder %s29, 0
      %p133 = por %p131, %p132
      %p134 = scmp.ne.s32.totalorder %s126, %s128
      %p135 = scmp.eq.s32.totalorder %s34, 1
      %p136 = por %p134, %p135
      %p137 = scmp.ne.s32.totalorder %s128, %s129
      %p138 = scmp.eq.s32.totalorder %s34, 0
      %p139 = por %p137, %p138
      %p140 = scmp.ne.s32.totalorder %s128, %s129
      %p141 = scmp.eq.s32.totalorder %s35, 1
      %p142 = por %p140, %p141
      %p144 = scmp.ne.s32.totalorder %s129, %s143
      %p145 = scmp.eq.s32.totalorder %s35, 0
      %p146 = por %p144, %p145
      %s148 = sadd.s32 %s147, 1
      %p151 = scmp.eq.s32.totalorder %s29, 1
      %p152 = scmp.ne.s32.totalorder %s147, %s149
      %p153 = scmp.eq.s32.totalorder %s29, 0
      %p154 = por %p152, %p153
      %p155 = scmp.ne.s32.totalorder %s147, %s149
      %p156 = scmp.eq.s32.totalorder %s34, 1
      %p157 = por %p155, %p156
      %p158 = scmp.ne.s32.totalorder %s149, %s150
      %p159 = scmp.eq.s32.totalorder %s34, 0
      %p160 = por %p158, %p159
      %p161 = scmp.ne.s32.totalorder %s149, %s150
      %p162 = scmp.eq.s32.totalorder %s35, 1
      %p163 = por %p161, %p162
      %p165 = scmp.ne.s32.totalorder %s150, %s164
      %p166 = scmp.eq.s32.totalorder %s35, 0
      %p167 = por %p165, %p166
      %s169 = sadd.s32 %s168, 1
      %p172 = scmp.eq.s32.totalorder %s29, 1
      %p173 = scmp.ne.s32.totalorder %s168, %s170
      %p174 = scmp.eq.s32.totalorder %s29, 0
      %p175 = por %p173, %p174
      %p176 = scmp.ne.s32.totalorder %s168, %s170
      %p177 = scmp.eq.s32.totalorder %s34, 1
      %p178 = por %p176, %p177
      %p179 = scmp.ne.s32.totalorder %s170, %s171
      %p180 = scmp.eq.s32.totalorder %s34, 0
      %p181 = por %p179, %p180
      %p182 = scmp.ne.s32.totalorder %s170, %s171
      %p183 = scmp.eq.s32.totalorder %s35, 1
      %p184 = por %p182, %p183
      %p186 = scmp.ne.s32.totalorder %s171, %s185
      %p187 = scmp.eq.s32.totalorder %s35, 0
      %p188 = por %p186, %p187
      %s190 = sadd.s32 %s189, 1
      %p193 = scmp.eq.s32.totalorder %s29, 1
      %p194 = scmp.ne.s32.totalorder %s189, %s191
      %p195 = scmp.eq.s32.totalorder %s29, 0
      %p196 = por %p194, %p195
      %p197 = scmp.ne.s32.totalorder %s189, %s191
      %p198 = scmp.eq.s32.totalorder %s34, 1
      %p199 = por %p197, %p198
      %p200 = scmp.ne.s32.totalorder %s191, %s192
      %p201 = scmp.eq.s32.totalorder %s34, 0
      %p202 = por %p200, %p201
      %p203 = scmp.ne.s32.totalorder %s191, %s192
      %p204 = scmp.eq.s32.totalorder %s35, 1
      %p205 = por %p203, %p204
      %p207 = scmp.ne.s32.totalorder %s192, %s206
      %p208 = scmp.eq.s32.totalorder %s35, 0
      %p209 = por %p207, %p208
      %s211 = sadd.s32 %s210, 1
      %p214 = scmp.eq.s32.totalorder %s29, 1
      %p215 = scmp.ne.s32.totalorder %s210, %s212
      %p216 = scmp.eq.s32.totalorder %s29, 0
      %p217 = por %p215, %p216
      %p218 = scmp.ne.s32.totalorder %s210, %s212
      %p219 = scmp.eq.s32.totalorder %s34, 1
      %p220 = por %p218, %p219
      %p221 = scmp.ne.s32.totalorder %s212, %s213
      %p222 = scmp.eq.s32.totalorder %s34, 0
      %p223 = por %p221, %p222
      %p224 = scmp.ne.s32.totalorder %s212, %s213
      %p225 = scmp.eq.s32.totalorder %s35, 1
      %p226 = por %p224, %p225
      %p228 = scmp.ne.s32.totalorder %s213, %s227
      %p229 = scmp.eq.s32.totalorder %s35, 0
      %p230 = por %p228, %p229
      %s232 = sadd.s32 %s231, 1
      %p235 = scmp.eq.s32.totalorder %s29, 1
      %p236 = scmp.ne.s32.totalorder %s231, %s233
      %p237 = scmp.eq.s32.totalorder %s29, 0
      %p238 = por %p236, %p237
      %p239 = scmp.ne.s32.totalorder %s231, %s233
      %p240 = scmp.eq.s32.totalorder %s34, 1
      %p241 = por %p239, %p240
      %p242 = scmp.ne.s32.totalorder %s233, %s234
      %p243 = scmp.eq.s32.totalorder %s34, 0
      %p244 = por %p242, %p243
      %p245 = scmp.ne.s32.totalorder %s233, %s234
      %p246 = scmp.eq.s32.totalorder %s35, 1
      %p247 = por %p245, %p246
      %p249 = scmp.ne.s32.totalorder %s234, %s248
      %p250 = scmp.eq.s32.totalorder %s35, 0
      %p251 = por %p249, %p250
      %s253 = sadd.s32 %s252, 1
      %p256 = scmp.eq.s32.totalorder %s29, 1
      %p257 = scmp.ne.s32.totalorder %s252, %s254
      %p258 = scmp.eq.s32.totalorder %s29, 0
      %p259 = por %p257, %p258
      %p260 = scmp.ne.s32.totalorder %s252, %s254
      %p261 = scmp.eq.s32.totalorder %s34, 1
      %p262 = por %p260, %p261
      %p263 = scmp.ne.s32.totalorder %s254, %s255
      %p264 = scmp.eq.s32.totalorder %s34, 0
      %p265 = por %p263, %p264
      %p266 = scmp.ne.s32.totalorder %s254, %s255
      %p267 = scmp.eq.s32.totalorder %s35, 1
      %p268 = por %p266, %p267
      %p270 = scmp.ne.s32.totalorder %s255, %s269
      %p271 = scmp.eq.s32.totalorder %s35, 0
      %p272 = por %p270, %p271
      %s274 = sadd.s32 %s273, 1
      %p277 = scmp.eq.s32.totalorder %s29, 1
      %p278 = scmp.ne.s32.totalorder %s273, %s275
      %p279 = scmp.eq.s32.totalorder %s29, 0
      %p280 = por %p278, %p279
      %p281 = scmp.ne.s32.totalorder %s273, %s275
      %p282 = scmp.eq.s32.totalorder %s34, 1
      %p283 = por %p281, %p282
      %p284 = scmp.ne.s32.totalorder %s275, %s276
      %p285 = scmp.eq.s32.totalorder %s34, 0
      %p286 = por %p284, %p285
      %p287 = scmp.ne.s32.totalorder %s275, %s276
      %p288 = scmp.eq.s32.totalorder %s35, 1
      %p289 = por %p287, %p288
      %p291 = scmp.ne.s32.totalorder %s276, %s290
      %p292 = scmp.eq.s32.totalorder %s35, 0
      %p293 = por %p291, %p292
      %s295 = sadd.s32 %s294, 1
      %p298 = scmp.eq.s32.totalorder %s29, 1
      %p299 = scmp.ne.s32.totalorder %s294, %s296
      %p300 = scmp.eq.s32.totalorder %s29, 0
      %p301 = por %p299, %p300
      %p302 = scmp.ne.s32.totalorder %s294, %s296
      %p303 = scmp.eq.s32.totalorder %s34, 1
      %p304 = por %p302, %p303
      %p305 = scmp.ne.s32.totalorder %s296, %s297
      %p306 = scmp.eq.s32.totalorder %s34, 0
      %p307 = por %p305, %p306
      %p308 = scmp.ne.s32.totalorder %s296, %s297
      %p309 = scmp.eq.s32.totalorder %s35, 1
      %p310 = por %p308, %p309
      %p312 = scmp.ne.s32.totalorder %s297, %s311
      %p313 = scmp.eq.s32.totalorder %s35, 0
      %p314 = por %p312, %p313
      %s316 = sadd.s32 %s315, 1
      %p319 = scmp.eq.s32.totalorder %s29, 1
      %p320 = scmp.ne.s32.totalorder %s315, %s317
      %p321 = scmp.eq.s32.totalorder %s29, 0
      %p322 = por %p320, %p321
      %p323 = scmp.ne.s32.totalorder %s315, %s317
      %p324 = scmp.eq.s32.totalorder %s34, 1
      %p325 = por %p323, %p324
      %p326 = scmp.ne.s32.totalorder %s317, %s318
      %p327 = scmp.eq.s32.totalorder %s34, 0
      %p328 = por %p326, %p327
      %p329 = scmp.ne.s32.totalorder %s317, %s318
      %p330 = scmp.eq.s32.totalorder %s35, 1
      %p331 = por %p329, %p330
      %p333 = scmp.ne.s32.totalorder %s318, %s332
      %p334 = scmp.eq.s32.totalorder %s35, 0
      %p335 = por %p333, %p334
      %s337 = sadd.s32 %s336, 1
      %p340 = scmp.eq.s32.totalorder %s29, 1
      %p341 = scmp.ne.s32.totalorder %s336, %s338
      %p342 = scmp.eq.s32.totalorder %s29, 0
      %p343 = por %p341, %p342
      %p344 = scmp.ne.s32.totalorder %s336, %s338
      %p345 = scmp.eq.s32.totalorder %s34, 1
      %p346 = por %p344, %p345
      %p347 = scmp.ne.s32.totalorder %s338, %s339
      %p348 = scmp.eq.s32.totalorder %s34, 0
      %p349 = por %p347, %p348
      %p350 = scmp.ne.s32.totalorder %s338, %s339
      %p351 = scmp.eq.s32.totalorder %s35, 1
      %p352 = por %p350, %p351
      %p354 = scmp.ne.s32.totalorder %s339, %s353
      %p355 = scmp.eq.s32.totalorder %s35, 0
      %p356 = por %p354, %p355
      %s358 = sadd.s32 %s357, 1
      %p361 = scmp.eq.s32.totalorder %s29, 1
      %p362 = scmp.ne.s32.totalorder %s357, %s359
      %p363 = scmp.eq.s32.totalorder %s29, 0
      %p364 = por %p362, %p363
      %p365 = scmp.ne.s32.totalorder %s357, %s359
      %p366 = scmp.eq.s32.totalorder %s34, 1
      %p367 = por %p365, %p366
      %p368 = scmp.ne.s32.totalorder %s359, %s360
      %p369 = scmp.eq.s32.totalorder %s34, 0
      %p370 = por %p368, %p369
      %p371 = scmp.ne.s32.totalorder %s359, %s360
      %p372 = scmp.eq.s32.totalorder %s35, 1
      %p373 = por %p371, %p372
      %p375 = scmp.ne.s32.totalorder %s360, %s374
      %p376 = scmp.eq.s32.totalorder %s35, 0
      %p377 = por %p375, %p376
      %s378 = ssub.s32 %s29, %s36
      %p379 = scmp.eq.s32.totalorder %s378, 0
      %s381 = sadd.s32 %s380, 1
      %s382 = scalar_select %p379, %s380, %s381
      %p385 = pneg %p379
      %p386 = scmp.eq.s32.totalorder %s29, 1
      %p387 = por %p385, %p386
      %p388 = scmp.ne.s32.totalorder %s380, %s383
      %p389 = scmp.eq.s32.totalorder %s29, 0
      %p390 = por %p388, %p389
      %p391 = scmp.ne.s32.totalorder %s380, %s383
      %p392 = scmp.eq.s32.totalorder %s34, 1
      %p393 = por %p391, %p392
      %p394 = scmp.ne.s32.totalorder %s383, %s384
      %p395 = scmp.eq.s32.totalorder %s34, 0
      %p396 = por %p394, %p395
      %p397 = scmp.ne.s32.totalorder %s383, %s384
      %p398 = scmp.eq.s32.totalorder %s35, 1
      %p399 = por %p397, %p398
      %p401 = scmp.ne.s32.totalorder %s384, %s400
      %p402 = scmp.eq.s32.totalorder %s35, 0
      %p403 = por %p401, %p402
      %p404 = scmp.le.s32.totalorder 1, %s29
      %p405 = scmp.lt.s32.totalorder %s29, 3
      %p406 = pnand %p404, %p405
      %p407 = pneg %p406
      // Predicated region
      $region9: #{tpu_custom_call.1} parent=5 // pred_check
        _
      $region10: #{tpu_custom_call.1} parent=5 // pred_check_branch
        %409 = sbr.rel (%p406) target = $region12
      $region11: #{tpu_custom_call.1} parent=5 // pred_region
        %s410 = ssub.s32 %s29, 1
        // Predicated region
        $region13: #{tpu_custom_call.1} parent=11 // pred_check
          %p411 = pneg %p76
        $region14: #{tpu_custom_call.1} parent=11 // pred_check_branch
          %413 = sbr.rel (%p411) target = $region16
        $region15: #{tpu_custom_call.1} parent=11 // pred_region
          %s415 = ssub.s32 128, 128
          %416 = vsyncadd [#allocation6], %s415
          %s418 = sshll.u32 [#allocation5], 4
          %s419 = int_to_ptr.vmem [resolvable:$true] %s418
          %421 = dma.hbm_to_vmem [thread:$0]  %s1, 128, %s419, [#allocation6]
        $region16: #{tpu_custom_call.1} parent=11 // pred_fallthru
          _
        // Predicated region
        $region17: #{tpu_custom_call.1} parent=11 // pred_check
          %p422 = pneg %p97
        $region18: #{tpu_custom_call.1} parent=11 // pred_check_branch
          %424 = sbr.rel (%p422) target = $region20
        $region19: #{tpu_custom_call.1} parent=11 // pred_region
          _
        $region20: #{tpu_custom_call.1} parent=11 // pred_fallthru
          _
        // Predicated region
        $region21: #{tpu_custom_call.1} parent=11 // pred_check
          %p425 = pneg %p118
        $region22: #{tpu_custom_call.1} parent=11 // pred_check_branch
          %427 = sbr.rel (%p425) target = $region24
        $region23: #{tpu_custom_call.1} parent=11 // pred_region
          _
        $region24: #{tpu_custom_call.1} parent=11 // pred_fallthru
          _
        // Predicated region
        $region25: #{tpu_custom_call.1} parent=11 // pred_check
          %p428 = pneg %p139
        $region26: #{tpu_custom_call.1} parent=11 // pred_check_branch
          %430 = sbr.rel (%p428) target = $region28
        $region27: #{tpu_custom_call.1} parent=11 // pred_region
          _
        $region28: #{tpu_custom_call.1} parent=11 // pred_fallthru
          _
        // Predicated region
        $region29: #{tpu_custom_call.1} parent=11 // pred_check
          %p431 = pneg %p160
        $region30: #{tpu_custom_call.1} parent=11 // pred_check_branch
          %433 = sbr.rel (%p431) target = $region32
        $region31: #{tpu_custom_call.1} parent=11 // pred_region
          _
        $region32: #{tpu_custom_call.1} parent=11 // pred_fallthru
          _
        // Predicated region
        $region33: #{tpu_custom_call.1} parent=11 // pred_check
          %p434 = pneg %p181
        $region34: #{tpu_custom_call.1} parent=11 // pred_check_branch
          %436 = sbr.rel (%p434) target = $region36
        $region35: #{tpu_custom_call.1} parent=11 // pred_region
          _
        $region36: #{tpu_custom_call.1} parent=11 // pred_fallthru
          _
        // Predicated region
        $region37: #{tpu_custom_call.1} parent=11 // pred_check
          %p437 = pneg %p202
        $region38: #{tpu_custom_call.1} parent=11 // pred_check_branch
          %439 = sbr.rel (%p437) target = $region40
        $region39: #{tpu_custom_call.1} parent=11 // pred_region
          _
        $region40: #{tpu_custom_call.1} parent=11 // pred_fallthru
          _
        // Predicated region
        $region41: #{tpu_custom_call.1} parent=11 // pred_check
          %p440 = pneg %p223
        $region42: #{tpu_custom_call.1} parent=11 // pred_check_branch
          %442 = sbr.rel (%p440) target = $region44
        $region43: #{tpu_custom_call.1} parent=11 // pred_region
          _
        $region44: #{tpu_custom_call.1} parent=11 // pred_fallthru
          _
        // Predicated region
        $region45: #{tpu_custom_call.1} parent=11 // pred_check
          %p443 = pneg %p244
        $region46: #{tpu_custom_call.1} parent=11 // pred_check_branch
          %445 = sbr.rel (%p443) target = $region48
        $region47: #{tpu_custom_call.1} parent=11 // pred_region
          _
        $region48: #{tpu_custom_call.1} parent=11 // pred_fallthru
          _
        // Predicated region
        $region49: #{tpu_custom_call.1} parent=11 // pred_check
          %p446 = pneg %p265
        $region50: #{tpu_custom_call.1} parent=11 // pred_check_branch
          %448 = sbr.rel (%p446) target = $region52
        $region51: #{tpu_custom_call.1} parent=11 // pred_region
          _
        $region52: #{tpu_custom_call.1} parent=11 // pred_fallthru
          _
        // Predicated region
        $region53: #{tpu_custom_call.1} parent=11 // pred_check
          %p449 = pneg %p286
        $region54: #{tpu_custom_call.1} parent=11 // pred_check_branch
          %451 = sbr.rel (%p449) target = $region56
        $region55: #{tpu_custom_call.1} parent=11 // pred_region
          _
        $region56: #{tpu_custom_call.1} parent=11 // pred_fallthru
          _
        // Predicated region
        $region57: #{tpu_custom_call.1} parent=11 // pred_check
          %p452 = pneg %p307
        $region58: #{tpu_custom_call.1} parent=11 // pred_check_branch
          %454 = sbr.rel (%p452) target = $region60
        $region59: #{tpu_custom_call.1} parent=11 // pred_region
          _
        $region60: #{tpu_custom_call.1} parent=11 // pred_fallthru
          _
        // Predicated region
        $region61: #{tpu_custom_call.1} parent=11 // pred_check
          %p455 = pneg %p328
        $region62: #{tpu_custom_call.1} parent=11 // pred_check_branch
          %457 = sbr.rel (%p455) target = $region64
        $region63: #{tpu_custom_call.1} parent=11 // pred_region
          _
        $region64: #{tpu_custom_call.1} parent=11 // pred_fallthru
          _
        // Predicated region
        $region65: #{tpu_custom_call.1} parent=11 // pred_check
          %p458 = pneg %p349
        $region66: #{tpu_custom_call.1} parent=11 // pred_check_branch
          %460 = sbr.rel (%p458) target = $region68
        $region67: #{tpu_custom_call.1} parent=11 // pred_region
          _
        $region68: #{tpu_custom_call.1} parent=11 // pred_fallthru
          _
        // Predicated region
        $region69: #{tpu_custom_call.1} parent=11 // pred_check
          %p461 = pneg %p370
        $region70: #{tpu_custom_call.1} parent=11 // pred_check_branch
          %463 = sbr.rel (%p461) target = $region72
        $region71: #{tpu_custom_call.1} parent=11 // pred_region
          _
        $region72: #{tpu_custom_call.1} parent=11 // pred_fallthru
          _
      $region12: #{tpu_custom_call.1} parent=5 // pred_fallthru
        _
      %p464 = scmp.lt.s32.totalorder %s29, 2
      // Predicated region
      $region73: #{tpu_custom_call.1} parent=5 // pred_check
        %p465 = pneg %p464
      $region74: #{tpu_custom_call.1} parent=5 // pred_check_branch
        %467 = sbr.rel (%p465) target = $region76
      $region75: #{tpu_custom_call.1} parent=5 // pred_region
        // Predicated region
        $region77: #{tpu_custom_call.1} parent=75 // pred_check
          %p468 = pneg %p49
        $region78: #{tpu_custom_call.1} parent=75 // pred_check_branch
          %470 = sbr.rel (%p468) target = $region80
        $region79: #{tpu_custom_call.1} parent=75 // pred_region
          %s471 = sand.u32 %s39, 1
          %s472 = scalar_lea.sflag [#allocation3], %s471
          %s473 = sand.u32 %s39, 1
          %s474 = smul.addr %s473, 8
          %s475 = scalar_lea.vmem [#allocation2], %s474
          %s477 = ssub.s32 128, 128
          %478 = vsyncadd %s472, %s477
          %s479 = smul.addr %s29, 128
          %s480 = scalar_lea.hbm %s0, %s479
          %s482 = sshll.u32 %s475, 4
          %s483 = int_to_ptr.vmem [resolvable:$true] %s482
          %485 = dma.hbm_to_vmem [thread:$0]  %s480, 128, %s483, %s472
        $region80: #{tpu_custom_call.1} parent=75 // pred_fallthru
          _
      $region76: #{tpu_custom_call.1} parent=5 // pred_fallthru
        _
      %p486 = scmp.le.s32.totalorder 1, %s29
      %p487 = scmp.lt.s32.totalorder %s29, 3
      %p488 = pnand %p486, %p487
      %p489 = pneg %p488
      // Predicated region
      $region81: #{tpu_custom_call.1} parent=5 // pred_check
        _
      $region82: #{tpu_custom_call.1} parent=5 // pred_check_branch
        %491 = sbr.rel (%p488) target = $region84
      $region83: #{tpu_custom_call.1} parent=5 // pred_region
        %s492 = ssub.s32 %s29, 1
        %s493 = sand.u32 %s42, 1
        %s494 = scalar_lea.sflag [#allocation3], %s493
        %s495 = sand.u32 %s42, 1
        %s496 = smul.addr %s495, 8
        %s497 = scalar_lea.vmem [#allocation2], %s496
        // Predicated region
        $region85: #{tpu_custom_call.1} parent=83 // pred_check
          %p498 = pneg %p55
        $region86: #{tpu_custom_call.1} parent=83 // pred_check_branch
          %500 = sbr.rel (%p498) target = $region88
        $region87: #{tpu_custom_call.1} parent=83 // pred_region
          %501 = dma.done %s494, 128
        $region88: #{tpu_custom_call.1} parent=83 // pred_fallthru
          _
        // Predicated region
        $region89: #{tpu_custom_call.1} parent=83 // pred_check
          %p502 = pneg %p76
        $region90: #{tpu_custom_call.1} parent=83 // pred_check_branch
          %504 = sbr.rel (%p502) target = $region92
        $region91: #{tpu_custom_call.1} parent=83 // pred_region
          %505 = dma.done [#allocation6], 128
        $region92: #{tpu_custom_call.1} parent=83 // pred_fallthru
          _
        %s506 = sand.u32 %s42, 1
        %s507 = scalar_lea.sflag [#allocation3], %s506
        %s508 = sand.u32 %s42, 1
        %s509 = smul.addr %s508, 8
        %s510 = scalar_lea.vmem [#allocation2], %s509
        %p511 = pneg %p55
        %p512 = pneg %p52
        %p513 = pneg %p76
        %p514 = pneg %p73
        %p515 = pneg %p97
        %p516 = pneg %p94
        %p517 = pneg %p118
        %p518 = pneg %p115
        %p519 = pneg %p139
        %p520 = pneg %p136
        %p521 = pneg %p160
        %p522 = pneg %p157
        %p523 = pneg %p181
        %p524 = pneg %p178
        %p525 = pneg %p202
        %p526 = pneg %p199
        %p527 = pneg %p223
        %p528 = pneg %p220
        %p529 = pneg %p244
        %p530 = pneg %p241
        %p531 = pneg %p265
        %p532 = pneg %p262
        %p533 = pneg %p286
        %p534 = pneg %p283
        %p535 = pneg %p307
        %p536 = pneg %p304
        %p537 = pneg %p328
        %p538 = pneg %p325
        %p539 = pneg %p349
        %p540 = pneg %p346
        %p541 = pneg %p370
        %p542 = pneg %p367
        %p543 = pneg %p396
        %p544 = pneg %p393
        %s545 = sand.u32 %s383, 1
        %s546 = scalar_lea.sflag [#allocation4], %s545
        %s547 = sand.u32 %s383, 1
        %s548 = smul.addr %s547, 8
        %s549 = scalar_lea.vmem [#allocation7], %s548
        %v550 = vld [vmem:[%s497] sm:$0xff]
        %vm551 = vcmask 261120
        %552 = vst.msk [vmem:[%s549] sm:$0xff] %vm551, %v550
        %v553 = vld [vmem:[#allocation5] sm:$0xff]
        loop: start=0, step=1, limit=2
        $region93: #{tpu_custom_call.1} parent=83 // loop_pre_header
          _
        $region94: #{tpu_custom_call.1} parent=83 // loop_header
          %s555 = sphi 0, %s559
          %p556 = scmp.ge.s32.totalorder %s555, 2
        $region95: #{tpu_custom_call.1} parent=83 // loop_header_branch
          %558 = sbr.rel (%p556) target = $region99
        $region96: #{tpu_custom_call.1} parent=83 // loop_body
          %v560 = vld [vmem:[%s549] sm:$0xff]
          %s561 = scalar_lea.vmem %s2, %s555
          %v562 = vld [vmem:[%s561] sm:$0x1]
          %s563 = scalar_lea.vmem %s3, %s555
          %v564 = vld [vmem:[%s563] sm:$0x1]
          %v565 = vsel %vm551, %v560, 0.0
          %566 = vadd.xlane.f32.xlu0 %v565
          %v567 = vpop.xlane.xlu0 %566
          %v568 = vrcp.pop 32.0
          %v569 = vmul.f32 %v567, %v568
          %v570 = vsub.f32 %v560, %v569
          %v571 = vmul.f32 %v570, %v570
          %v572 = vsel %vm551, %v571, 0.0
          %573 = vadd.xlane.f32.xlu0 %v572
          %v574 = vpop.xlane.xlu0 %573
          %v575 = vmul.f32 %v574, %v568
          %v576 = vadd.f32 %v575, 1e-05
          %v577 = vrsqrt.pop %v576
          %v578 = vmul.f32 %v570, %v577
          %v580 = vlaneseq
          %v581 = vshrl.u32 %v580, 7
          %v582 = vsub.s32 0, %v581
          %v583 = vrot.slane %v562, %v582
          %v585 = vmul.f32 %v578, %v583
          %v587 = vlaneseq
          %v588 = vshrl.u32 %v587, 7
          %v589 = vsub.s32 0, %v588
          %v590 = vrot.slane %v564, %v589
          %v592 = vadd.f32 %v585, %v590
          %s593 = smul.u32 %s555, 32
          %s594 = scalar_lea.vmem %s4, %s593
          %v595 = vld [vmem:[%s594] sm:$0xff]
          %v596 = vld [vmem:[%s594 + $0x8] sm:$0xff]
          %v597 = vld [vmem:[%s594 + $0x10] sm:$0xff]
          %v598 = vld [vmem:[%s594 + $0x18] sm:$0xff]
          %s599 = scalar_lea.vmem %s5, %s555
          %v600 = vld [vmem:[%s599] sm:$0x1]
          %v602 = vlaneseq
          %v603 = vshrl.u32 %v602, 7
          %v604 = vsub.s32 0, %v603
          %v605 = vrot.slane %v600, %v604
          %v608 = vsel %vm551, %v592, 0
          %610 = vmatprep.subr.mxu0 0.0
          %611 = vmatpush1.msra.mxu0 %v595
          %612 = vmatprep.subr.mxu0 0.0
          %613 = vmatpush1.msra.mxu0 %v596
          %614 = vmatprep.subr.mxu0 0.0
          %615 = vmatpush1.msra.mxu0 %v597
          %616 = vmatprep.subr.mxu0 0.0
          %617 = vmatpush1.msra.mxu0 %v598
          %618 = vmatprep.subr.mxu0 0.0
          %619 = vmatpush1.msra.mxu0 0.0
          %620 = vmatprep.subr.mxu0 0.0
          %621 = vmatpush1.msra.mxu0 0.0
          %622 = vmatprep.subr.mxu0 0.0
          %623 = vmatpush1.msra.mxu0 0.0
          %624 = vmatprep.subr.mxu0 0.0
          %625 = vmatpush1.msra.mxu0 0.0
          %626 = vmatprep.subr.mxu0 0.0
          %627 = vmatpush1.msra.mxu0 0.0
          %628 = vmatprep.subr.mxu0 0.0
          %629 = vmatpush1.msra.mxu0 0.0
          %630 = vmatprep.subr.mxu0 0.0
          %631 = vmatpush1.msra.mxu0 0.0
          %632 = vmatprep.subr.mxu0 0.0
          %633 = vmatpush1.msra.mxu0 0.0
          %634 = vmatprep.subr.mxu0 0.0
          %635 = vmatpush1.msra.mxu0 0.0
          %636 = vmatprep.subr.mxu0 0.0
          %637 = vmatpush1.msra.mxu0 0.0
          %638 = vmatprep.subr.mxu0 0.0
          %639 = vmatpush1.msra.mxu0 0.0
          %640 = vmatprep.subr.mxu0 0.0
          %641 = vmatpush1.msra.mxu0 0.0
          %642 = vmatprep.subr.mxu0 0.0
          %643 = vmatpush1.msra.mxu0 0.0
          %644 = vmatprep.subr.mxu0 0.0
          %645 = vmatpush1.msra.mxu0 0.0
          %646 = vmatprep.subr.mxu0 0.0
          %647 = vmatpush1.msra.mxu0 0.0
          %648 = vmatprep.subr.mxu0 0.0
          %649 = vmatpush1.msra.mxu0 0.0
          %650 = vmatprep.subr.mxu0 0.0
          %651 = vmatpush1.msra.mxu0 0.0
          %652 = vmatprep.subr.mxu0 0.0
          %653 = vmatpush1.msra.mxu0 0.0
          %654 = vmatprep.subr.mxu0 0.0
          %655 = vmatpush1.msra.mxu0 0.0
          %656 = vmatprep.subr.mxu0 0.0
          %657 = vmatpush1.msra.mxu0 0.0
          %658 = vmatprep.subr.mxu0 0.0
          %659 = vmatpush1.msra.mxu0 0.0
          %660 = vmatprep.subr.mxu0 0.0
          %661 = vmatpush1.msra.mxu0 0.0
          %662 = vmatprep.subr.mxu0 0.0
          %663 = vmatpush1.msra.mxu0 0.0
          %664 = vmatprep.subr.mxu0 0.0
          %665 = vmatpush1.msra.mxu0 0.0
          %666 = vmatprep.subr.mxu0 0.0
          %667 = vmatpush1.msra.mxu0 0.0
          %668 = vmatprep.subr.mxu0 0.0
          %669 = vmatpush1.msra.mxu0 0.0
          %670 = vmatprep.subr.mxu0 0.0
          %671 = vmatpush1.msra.mxu0 0.0
          %672 = vmatprep.subr.mxu0 0.0
          %673 = vmatpush1.msra.mxu0 0.0
          %674 = vmatprep.mubr.f32.mxu0 0.0
          %675 = vmatmul.mubr.f32.gmra.mrb[0].mxu0 %v608
          %v676 = vpop.f32.mrb[0].mxu0
          %v677 = vadd.f32 %v605, %v676
          %v678 = vpop.f32.mrb[0].mxu0
          %679 = vdwg.mxu0
          %681 = vrot.lane.b32.xlu0 %v677, 120
          %v682 = vpop.permute.xlu0 %681
          %683 = vrot.lane.b32.xlu0 %v677, 112
          %v684 = vpop.permute.xlu0 %683
          %685 = vrot.lane.b32.xlu0 %v677, 104
          %v686 = vpop.permute.xlu0 %685
          %687 = vrot.lane.b32.xlu0 %v677, 96
          %v688 = vpop.permute.xlu0 %687
          %vm689 = vcmask 64512
          %v690 = vsel %vm689, %v677, 0
          %v692 = vsel %vm689, %v688, 0
          %694 = vmatprep.subr.mxu0 0.0
          %695 = vmatpush1.xpose.msra.mxu0 %v692
          %696 = vmatprep.subr.mxu0 0.0
          %697 = vmatpush1.xpose.msra.mxu0 0.0
          %698 = vmatprep.subr.mxu0 0.0
          %699 = vmatpush1.xpose.msra.mxu0 0.0
          %700 = vmatprep.subr.mxu0 0.0
          %701 = vmatpush1.xpose.msra.mxu0 0.0
          %702 = vmatprep.subr.mxu0 0.0
          %703 = vmatpush1.xpose.msra.mxu0 0.0
          %704 = vmatprep.subr.mxu0 0.0
          %705 = vmatpush1.xpose.msra.mxu0 0.0
          %706 = vmatprep.subr.mxu0 0.0
          %707 = vmatpush1.xpose.msra.mxu0 0.0
          %708 = vmatprep.subr.mxu0 0.0
          %709 = vmatpush1.xpose.msra.mxu0 0.0
          %710 = vmatprep.subr.mxu0 0.0
          %711 = vmatpush1.xpose.msra.mxu0 0.0
          %712 = vmatprep.subr.mxu0 0.0
          %713 = vmatpush1.xpose.msra.mxu0 0.0
          %714 = vmatprep.subr.mxu0 0.0
          %715 = vmatpush1.xpose.msra.mxu0 0.0
          %716 = vmatprep.subr.mxu0 0.0
          %717 = vmatpush1.xpose.msra.mxu0 0.0
          %718 = vmatprep.subr.mxu0 0.0
          %719 = vmatpush1.xpose.msra.mxu0 0.0
          %720 = vmatprep.subr.mxu0 0.0
          %721 = vmatpush1.xpose.msra.mxu0 0.0
          %722 = vmatprep.subr.mxu0 0.0
          %723 = vmatpush1.xpose.msra.mxu0 0.0
          %724 = vmatprep.subr.mxu0 0.0
          %725 = vmatpush1.xpose.msra.mxu0 0.0
          %726 = vmatprep.subr.mxu0 0.0
          %727 = vmatpush1.xpose.msra.mxu0 0.0
          %728 = vmatprep.subr.mxu0 0.0
          %729 = vmatpush1.xpose.msra.mxu0 0.0
          %730 = vmatprep.subr.mxu0 0.0
          %731 = vmatpush1.xpose.msra.mxu0 0.0
          %732 = vmatprep.subr.mxu0 0.0
          %733 = vmatpush1.xpose.msra.mxu0 0.0
          %734 = vmatprep.subr.mxu0 0.0
          %735 = vmatpush1.xpose.msra.mxu0 0.0
          %736 = vmatprep.subr.mxu0 0.0
          %737 = vmatpush1.xpose.msra.mxu0 0.0
          %738 = vmatprep.subr.mxu0 0.0
          %739 = vmatpush1.xpose.msra.mxu0 0.0
          %740 = vmatprep.subr.mxu0 0.0
          %741 = vmatpush1.xpose.msra.mxu0 0.0
          %742 = vmatprep.subr.mxu0 0.0
          %743 = vmatpush1.xpose.msra.mxu0 0.0
          %744 = vmatprep.subr.mxu0 0.0
          %745 = vmatpush1.xpose.msra.mxu0 0.0
          %746 = vmatprep.subr.mxu0 0.0
          %747 = vmatpush1.xpose.msra.mxu0 0.0
          %748 = vmatprep.subr.mxu0 0.0
          %749 = vmatpush1.xpose.msra.mxu0 0.0
          %750 = vmatprep.subr.mxu0 0.0
          %751 = vmatpush1.xpose.msra.mxu0 0.0
          %752 = vmatprep.subr.mxu0 0.0
          %753 = vmatpush1.xpose.msra.mxu0 0.0
          %754 = vmatprep.subr.mxu0 0.0
          %755 = vmatpush1.xpose.msra.mxu0 0.0
          %756 = vmatprep.subr.mxu0 0.0
          %757 = vmatpush1.xpose.msra.mxu0 0.0
          %758 = vmatprep.mubr.f32.mxu0 0.0
          %759 = vmatmul.mubr.f32.gmra.mrb[0].mxu0 %v690
          %v760 = vpop.f32.mrb[0].mxu0
          %v761 = vadd.f32 %v553, %v760
          %v762 = vpop.f32.mrb[0].mxu0
          %763 = vdwg.mxu0
          %764 = vrot.lane.b32.xlu0 %v682, 96
          %v765 = vpop.permute.xlu0 %764
          %v766 = vsel %vm689, %v682, 0
          %v768 = vsel %vm689, %v765, 0
          %770 = vmatprep.subr.mxu0 0.0
          %771 = vmatpush1.xpose.msra.mxu0 %v768
          %772 = vmatprep.subr.mxu0 0.0
          %773 = vmatpush1.xpose.msra.mxu0 0.0
          %774 = vmatprep.subr.mxu0 0.0
          %775 = vmatpush1.xpose.msra.mxu0 0.0
          %776 = vmatprep.subr.mxu0 0.0
          %777 = vmatpush1.xpose.msra.mxu0 0.0
          %778 = vmatprep.subr.mxu0 0.0
          %779 = vmatpush1.xpose.msra.mxu0 0.0
          %780 = vmatprep.subr.mxu0 0.0
          %781 = vmatpush1.xpose.msra.mxu0 0.0
          %782 = vmatprep.subr.mxu0 0.0
          %783 = vmatpush1.xpose.msra.mxu0 0.0
          %784 = vmatprep.subr.mxu0 0.0
          %785 = vmatpush1.xpose.msra.mxu0 0.0
          %786 = vmatprep.subr.mxu0 0.0
          %787 = vmatpush1.xpose.msra.mxu0 0.0
          %788 = vmatprep.subr.mxu0 0.0
          %789 = vmatpush1.xpose.msra.mxu0 0.0
          %790 = vmatprep.subr.mxu0 0.0
          %791 = vmatpush1.xpose.msra.mxu0 0.0
          %792 = vmatprep.subr.mxu0 0.0
          %793 = vmatpush1.xpose.msra.mxu0 0.0
          %794 = vmatprep.subr.mxu0 0.0
          %795 = vmatpush1.xpose.msra.mxu0 0.0
          %796 = vmatprep.subr.mxu0 0.0
          %797 = vmatpush1.xpose.msra.mxu0 0.0
          %798 = vmatprep.subr.mxu0 0.0
          %799 = vmatpush1.xpose.msra.mxu0 0.0
          %800 = vmatprep.subr.mxu0 0.0
          %801 = vmatpush1.xpose.msra.mxu0 0.0
          %802 = vmatprep.subr.mxu0 0.0
          %803 = vmatpush1.xpose.msra.mxu0 0.0
          %804 = vmatprep.subr.mxu0 0.0
          %805 = vmatpush1.xpose.msra.mxu0 0.0
          %806 = vmatprep.subr.mxu0 0.0
          %807 = vmatpush1.xpose.msra.mxu0 0.0
          %808 = vmatprep.subr.mxu0 0.0
          %809 = vmatpush1.xpose.msra.mxu0 0.0
          %810 = vmatprep.subr.mxu0 0.0
          %811 = vmatpush1.xpose.msra.mxu0 0.0
          %812 = vmatprep.subr.mxu0 0.0
          %813 = vmatpush1.xpose.msra.mxu0 0.0
          %814 = vmatprep.subr.mxu0 0.0
          %815 = vmatpush1.xpose.msra.mxu0 0.0
          %816 = vmatprep.subr.mxu0 0.0
          %817 = vmatpush1.xpose.msra.mxu0 0.0
          %818 = vmatprep.subr.mxu0 0.0
          %819 = vmatpush1.xpose.msra.mxu0 0.0
          %820 = vmatprep.subr.mxu0 0.0
          %821 = vmatpush1.xpose.msra.mxu0 0.0
          %822 = vmatprep.subr.mxu0 0.0
          %823 = vmatpush1.xpose.msra.mxu0 0.0
          %824 = vmatprep.subr.mxu0 0.0
          %825 = vmatpush1.xpose.msra.mxu0 0.0
          %826 = vmatprep.subr.mxu0 0.0
          %827 = vmatpush1.xpose.msra.mxu0 0.0
          %828 = vmatprep.subr.mxu0 0.0
          %829 = vmatpush1.xpose.msra.mxu0 0.0
          %830 = vmatprep.subr.mxu0 0.0
          %831 = vmatpush1.xpose.msra.mxu0 0.0
          %832 = vmatprep.subr.mxu0 0.0
          %833 = vmatpush1.xpose.msra.mxu0 0.0
          %834 = vmatprep.mubr.f32.mxu0 0.0
          %835 = vmatmul.mubr.f32.gmra.mrb[0].mxu0 %v766
          %v836 = vpop.f32.mrb[0].mxu0
          %v837 = vadd.f32 %v553, %v836
          %v838 = vpop.f32.mrb[0].mxu0
          %839 = vdwg.mxu0
          %840 = vrot.lane.b32.xlu0 %v684, 96
          %v841 = vpop.permute.xlu0 %840
          %v842 = vsel %vm689, %v684, 0
          %v844 = vsel %vm689, %v841, 0
          %846 = vmatprep.subr.mxu0 0.0
          %847 = vmatpush1.xpose.msra.mxu0 %v844
          %848 = vmatprep.subr.mxu0 0.0
          %849 = vmatpush1.xpose.msra.mxu0 0.0
          %850 = vmatprep.subr.mxu0 0.0
          %851 = vmatpush1.xpose.msra.mxu0 0.0
          %852 = vmatprep.subr.mxu0 0.0
          %853 = vmatpush1.xpose.msra.mxu0 0.0
          %854 = vmatprep.subr.mxu0 0.0
          %855 = vmatpush1.xpose.msra.mxu0 0.0
          %856 = vmatprep.subr.mxu0 0.0
          %857 = vmatpush1.xpose.msra.mxu0 0.0
          %858 = vmatprep.subr.mxu0 0.0
          %859 = vmatpush1.xpose.msra.mxu0 0.0
          %860 = vmatprep.subr.mxu0 0.0
          %861 = vmatpush1.xpose.msra.mxu0 0.0
          %862 = vmatprep.subr.mxu0 0.0
          %863 = vmatpush1.xpose.msra.mxu0 0.0
          %864 = vmatprep.subr.mxu0 0.0
          %865 = vmatpush1.xpose.msra.mxu0 0.0
          %866 = vmatprep.subr.mxu0 0.0
          %867 = vmatpush1.xpose.msra.mxu0 0.0
          %868 = vmatprep.subr.mxu0 0.0
          %869 = vmatpush1.xpose.msra.mxu0 0.0
          %870 = vmatprep.subr.mxu0 0.0
          %871 = vmatpush1.xpose.msra.mxu0 0.0
          %872 = vmatprep.subr.mxu0 0.0
          %873 = vmatpush1.xpose.msra.mxu0 0.0
          %874 = vmatprep.subr.mxu0 0.0
          %875 = vmatpush1.xpose.msra.mxu0 0.0
          %876 = vmatprep.subr.mxu0 0.0
          %877 = vmatpush1.xpose.msra.mxu0 0.0
          %878 = vmatprep.subr.mxu0 0.0
          %879 = vmatpush1.xpose.msra.mxu0 0.0
          %880 = vmatprep.subr.mxu0 0.0
          %881 = vmatpush1.xpose.msra.mxu0 0.0
          %882 = vmatprep.subr.mxu0 0.0
          %883 = vmatpush1.xpose.msra.mxu0 0.0
          %884 = vmatprep.subr.mxu0 0.0
          %885 = vmatpush1.xpose.msra.mxu0 0.0
          %886 = vmatprep.subr.mxu0 0.0
          %887 = vmatpush1.xpose.msra.mxu0 0.0
          %888 = vmatprep.subr.mxu0 0.0
          %889 = vmatpush1.xpose.msra.mxu0 0.0
          %890 = vmatprep.subr.mxu0 0.0
          %891 = vmatpush1.xpose.msra.mxu0 0.0
          %892 = vmatprep.subr.mxu0 0.0
          %893 = vmatpush1.xpose.msra.mxu0 0.0
          %894 = vmatprep.subr.mxu0 0.0
          %895 = vmatpush1.xpose.msra.mxu0 0.0
          %896 = vmatprep.subr.mxu0 0.0
          %897 = vmatpush1.xpose.msra.mxu0 0.0
          %898 = vmatprep.subr.mxu0 0.0
          %899 = vmatpush1.xpose.msra.mxu0 0.0
          %900 = vmatprep.subr.mxu0 0.0
          %901 = vmatpush1.xpose.msra.mxu0 0.0
          %902 = vmatprep.subr.mxu0 0.0
          %903 = vmatpush1.xpose.msra.mxu0 0.0
          %904 = vmatprep.subr.mxu0 0.0
          %905 = vmatpush1.xpose.msra.mxu0 0.0
          %906 = vmatprep.subr.mxu0 0.0
          %907 = vmatpush1.xpose.msra.mxu0 0.0
          %908 = vmatprep.subr.mxu0 0.0
          %909 = vmatpush1.xpose.msra.mxu0 0.0
          %910 = vmatprep.mubr.f32.mxu0 0.0
          %911 = vmatmul.mubr.f32.gmra.mrb[0].mxu0 %v842
          %v912 = vpop.f32.mrb[0].mxu0
          %v913 = vadd.f32 %v553, %v912
          %v914 = vpop.f32.mrb[0].mxu0
          %915 = vdwg.mxu0
          %916 = vrot.lane.b32.xlu0 %v686, 96
          %v917 = vpop.permute.xlu0 %916
          %v918 = vsel %vm689, %v686, 0
          %v920 = vsel %vm689, %v917, 0
          %922 = vmatprep.subr.mxu0 0.0
          %923 = vmatpush1.xpose.msra.mxu0 %v920
          %924 = vmatprep.subr.mxu0 0.0
          %925 = vmatpush1.xpose.msra.mxu0 0.0
          %926 = vmatprep.subr.mxu0 0.0
          %927 = vmatpush1.xpose.msra.mxu0 0.0
          %928 = vmatprep.subr.mxu0 0.0
          %929 = vmatpush1.xpose.msra.mxu0 0.0
          %930 = vmatprep.subr.mxu0 0.0
          %931 = vmatpush1.xpose.msra.mxu0 0.0
          %932 = vmatprep.subr.mxu0 0.0
          %933 = vmatpush1.xpose.msra.mxu0 0.0
          %934 = vmatprep.subr.mxu0 0.0
          %935 = vmatpush1.xpose.msra.mxu0 0.0
          %936 = vmatprep.subr.mxu0 0.0
          %937 = vmatpush1.xpose.msra.mxu0 0.0
          %938 = vmatprep.subr.mxu0 0.0
          %939 = vmatpush1.xpose.msra.mxu0 0.0
          %940 = vmatprep.subr.mxu0 0.0
          %941 = vmatpush1.xpose.msra.mxu0 0.0
          %942 = vmatprep.subr.mxu0 0.0
          %943 = vmatpush1.xpose.msra.mxu0 0.0
          %944 = vmatprep.subr.mxu0 0.0
          %945 = vmatpush1.xpose.msra.mxu0 0.0
          %946 = vmatprep.subr.mxu0 0.0
          %947 = vmatpush1.xpose.msra.mxu0 0.0
          %948 = vmatprep.subr.mxu0 0.0
          %949 = vmatpush1.xpose.msra.mxu0 0.0
          %950 = vmatprep.subr.mxu0 0.0
          %951 = vmatpush1.xpose.msra.mxu0 0.0
          %952 = vmatprep.subr.mxu0 0.0
          %953 = vmatpush1.xpose.msra.mxu0 0.0
          %954 = vmatprep.subr.mxu0 0.0
          %955 = vmatpush1.xpose.msra.mxu0 0.0
          %956 = vmatprep.subr.mxu0 0.0
          %957 = vmatpush1.xpose.msra.mxu0 0.0
          %958 = vmatprep.subr.mxu0 0.0
          %959 = vmatpush1.xpose.msra.mxu0 0.0
          %960 = vmatprep.subr.mxu0 0.0
          %961 = vmatpush1.xpose.msra.mxu0 0.0
          %962 = vmatprep.subr.mxu0 0.0
          %963 = vmatpush1.xpose.msra.mxu0 0.0
          %964 = vmatprep.subr.mxu0 0.0
          %965 = vmatpush1.xpose.msra.mxu0 0.0
          %966 = vmatprep.subr.mxu0 0.0
          %967 = vmatpush1.xpose.msra.mxu0 0.0
          %968 = vmatprep.subr.mxu0 0.0
          %969 = vmatpush1.xpose.msra.mxu0 0.0
          %970 = vmatprep.subr.mxu0 0.0
          %971 = vmatpush1.xpose.msra.mxu0 0.0
          %972 = vmatprep.subr.mxu0 0.0
          %973 = vmatpush1.xpose.msra.mxu0 0.0
          %974 = vmatprep.subr.mxu0 0.0
          %975 = vmatpush1.xpose.msra.mxu0 0.0
          %976 = vmatprep.subr.mxu0 0.0
          %977 = vmatpush1.xpose.msra.mxu0 0.0
          %978 = vmatprep.subr.mxu0 0.0
          %979 = vmatpush1.xpose.msra.mxu0 0.0
          %980 = vmatprep.subr.mxu0 0.0
          %981 = vmatpush1.xpose.msra.mxu0 0.0
          %982 = vmatprep.subr.mxu0 0.0
          %983 = vmatpush1.xpose.msra.mxu0 0.0
          %984 = vmatprep.subr.mxu0 0.0
          %985 = vmatpush1.xpose.msra.mxu0 0.0
          %986 = vmatprep.mubr.f32.mxu0 0.0
          %987 = vmatmul.mubr.f32.gmra.mrb[0].mxu0 %v918
          %v988 = vpop.f32.mrb[0].mxu0
          %v989 = vadd.f32 %v553, %v988
          %v990 = vpop.f32.mrb[0].mxu0
          %991 = vdwg.mxu0
          %v992 = vsel %vm689, %v761, -inf
          %993 = vmax.xlane.f32.xlu0 %v992
          %v994 = vpop.xlane.xlu0 %993
          %v995 = vsel %vm689, %v837, -inf
          %996 = vmax.xlane.f32.xlu0 %v995
          %v997 = vpop.xlane.xlu0 %996
          %v998 = vsel %vm689, %v913, -inf
          %999 = vmax.xlane.f32.xlu0 %v998
          %v1000 = vpop.xlane.xlu0 %999
          %v1001 = vsel %vm689, %v989, -inf
          %1002 = vmax.xlane.f32.xlu0 %v1001
          %v1003 = vpop.xlane.xlu0 %1002
          %v1004 = vsub.f32 %v761, %v994
          %v1005 = vsub.f32 %v837, %v997
          %v1006 = vsub.f32 %v913, %v1000
          %v1007 = vsub.f32 %v989, %v1003
          %v1008 = vmul.f32 %v1004, 1.442695
          %v1009 = vpow.pop %v1008
          %v1010 = vmul.f32 %v1005, 1.442695
          %v1011 = vpow.pop %v1010
          %v1012 = vmul.f32 %v1006, 1.442695
          %v1013 = vpow.pop %v1012
          %v1014 = vmul.f32 %v1007, 1.442695
          %v1015 = vpow.pop %v1014
          %v1016 = vsel %vm689, %v1009, 0.0
          %1017 = vadd.xlane.f32.xlu0 %v1016
          %v1018 = vpop.xlane.xlu0 %1017
          %v1019 = vsel %vm689, %v1011, 0.0
          %1020 = vadd.xlane.f32.xlu0 %v1019
          %v1021 = vpop.xlane.xlu0 %1020
          %v1022 = vsel %vm689, %v1013, 0.0
          %1023 = vadd.xlane.f32.xlu0 %v1022
          %v1024 = vpop.xlane.xlu0 %1023
          %v1025 = vsel %vm689, %v1015, 0.0
          %1026 = vadd.xlane.f32.xlu0 %v1025
          %v1027 = vpop.xlane.xlu0 %1026
          %v1028 = vrcp.pop %v1018
          %v1029 = vmul.f32 %v1009, %v1028
          %v1030 = vrcp.pop %v1021
          %v1031 = vmul.f32 %v1011, %v1030
          %v1032 = vrcp.pop %v1024
          %v1033 = vmul.f32 %v1013, %v1032
          %v1034 = vrcp.pop %v1027
          %v1035 = vmul.f32 %v1015, %v1034
          %1036 = vrot.lane.b32.xlu0 %v677, 64
          %v1037 = vpop.permute.xlu0 %1036
          %v1040 = vsel %vm689, %v1029, 0
          %1042 = vmatprep.subr.mxu0 0.0
          %1043 = vmatpush1.msra.mxu0 %v1037
          %1044 = vmatprep.subr.mxu0 0.0
          %1045 = vmatpush1.msra.mxu0 0.0
          %1046 = vmatprep.subr.mxu0 0.0
          %1047 = vmatpush1.msra.mxu0 0.0
          %1048 = vmatprep.subr.mxu0 0.0
          %1049 = vmatpush1.msra.mxu0 0.0
          %1050 = vmatprep.subr.mxu0 0.0
          %1051 = vmatpush1.msra.mxu0 0.0
          %1052 = vmatprep.subr.mxu0 0.0
          %1053 = vmatpush1.msra.mxu0 0.0
          %1054 = vmatprep.subr.mxu0 0.0
          %1055 = vmatpush1.msra.mxu0 0.0
          %1056 = vmatprep.subr.mxu0 0.0
          %1057 = vmatpush1.msra.mxu0 0.0
          %1058 = vmatprep.subr.mxu0 0.0
          %1059 = vmatpush1.msra.mxu0 0.0
          %1060 = vmatprep.subr.mxu0 0.0
          %1061 = vmatpush1.msra.mxu0 0.0
          %1062 = vmatprep.subr.mxu0 0.0
          %1063 = vmatpush1.msra.mxu0 0.0
          %1064 = vmatprep.subr.mxu0 0.0
          %1065 = vmatpush1.msra.mxu0 0.0
          %1066 = vmatprep.subr.mxu0 0.0
          %1067 = vmatpush1.msra.mxu0 0.0
          %1068 = vmatprep.subr.mxu0 0.0
          %1069 = vmatpush1.msra.mxu0 0.0
          %1070 = vmatprep.subr.mxu0 0.0
          %1071 = vmatpush1.msra.mxu0 0.0
          %1072 = vmatprep.subr.mxu0 0.0
          %1073 = vmatpush1.msra.mxu0 0.0
          %1074 = vmatprep.subr.mxu0 0.0
          %1075 = vmatpush1.msra.mxu0 0.0
          %1076 = vmatprep.subr.mxu0 0.0
          %1077 = vmatpush1.msra.mxu0 0.0
          %1078 = vmatprep.subr.mxu0 0.0
          %1079 = vmatpush1.msra.mxu0 0.0
          %1080 = vmatprep.subr.mxu0 0.0
          %1081 = vmatpush1.msra.mxu0 0.0
          %1082 = vmatprep.subr.mxu0 0.0
          %1083 = vmatpush1.msra.mxu0 0.0
          %1084 = vmatprep.subr.mxu0 0.0
          %1085 = vmatpush1.msra.mxu0 0.0
          %1086 = vmatprep.subr.mxu0 0.0
          %1087 = vmatpush1.msra.mxu0 0.0
          %1088 = vmatprep.subr.mxu0 0.0
          %1089 = vmatpush1.msra.mxu0 0.0
          %1090 = vmatprep.subr.mxu0 0.0
          %1091 = vmatpush1.msra.mxu0 0.0
          %1092 = vmatprep.subr.mxu0 0.0
          %1093 = vmatpush1.msra.mxu0 0.0
          %1094 = vmatprep.subr.mxu0 0.0
          %1095 = vmatpush1.msra.mxu0 0.0
          %1096 = vmatprep.subr.mxu0 0.0
          %1097 = vmatpush1.msra.mxu0 0.0
          %1098 = vmatprep.subr.mxu0 0.0
          %1099 = vmatpush1.msra.mxu0 0.0
          %1100 = vmatprep.subr.mxu0 0.0
          %1101 = vmatpush1.msra.mxu0 0.0
          %1102 = vmatprep.subr.mxu0 0.0
          %1103 = vmatpush1.msra.mxu0 0.0
          %1104 = vmatprep.subr.mxu0 0.0
          %1105 = vmatpush1.msra.mxu0 0.0
          %1106 = vmatprep.mubr.f32.mxu0 0.0
          %1107 = vmatmul.mubr.f32.gmra.mrb[0].mxu0 %v1040
          %v1108 = vpop.f32.mrb[0].mxu0
          %v1109 = vadd.f32 0.0, %v1108
          %v1110 = vpop.f32.mrb[0].mxu0
          %1111 = vdwg.mxu0
          %1112 = vrot.lane.b32.xlu0 %v682, 64
          %v1113 = vpop.permute.xlu0 %1112
          %v1116 = vsel %vm689, %v1031, 0
          %1118 = vmatprep.subr.mxu0 0.0
          %1119 = vmatpush1.msra.mxu0 %v1113
          %1120 = vmatprep.subr.mxu0 0.0
          %1121 = vmatpush1.msra.mxu0 0.0
          %1122 = vmatprep.subr.mxu0 0.0
          %1123 = vmatpush1.msra.mxu0 0.0
          %1124 = vmatprep.subr.mxu0 0.0
          %1125 = vmatpush1.msra.mxu0 0.0
          %1126 = vmatprep.subr.mxu0 0.0
          %1127 = vmatpush1.msra.mxu0 0.0
          %1128 = vmatprep.subr.mxu0 0.0
          %1129 = vmatpush1.msra.mxu0 0.0
          %1130 = vmatprep.subr.mxu0 0.0
          %1131 = vmatpush1.msra.mxu0 0.0
          %1132 = vmatprep.subr.mxu0 0.0
          %1133 = vmatpush1.msra.mxu0 0.0
          %1134 = vmatprep.subr.mxu0 0.0
          %1135 = vmatpush1.msra.mxu0 0.0
          %1136 = vmatprep.subr.mxu0 0.0
          %1137 = vmatpush1.msra.mxu0 0.0
          %1138 = vmatprep.subr.mxu0 0.0
          %1139 = vmatpush1.msra.mxu0 0.0
          %1140 = vmatprep.subr.mxu0 0.0
          %1141 = vmatpush1.msra.mxu0 0.0
          %1142 = vmatprep.subr.mxu0 0.0
          %1143 = vmatpush1.msra.mxu0 0.0
          %1144 = vmatprep.subr.mxu0 0.0
          %1145 = vmatpush1.msra.mxu0 0.0
          %1146 = vmatprep.subr.mxu0 0.0
          %1147 = vmatpush1.msra.mxu0 0.0
          %1148 = vmatprep.subr.mxu0 0.0
          %1149 = vmatpush1.msra.mxu0 0.0
          %1150 = vmatprep.subr.mxu0 0.0
          %1151 = vmatpush1.msra.mxu0 0.0
          %1152 = vmatprep.subr.mxu0 0.0
          %1153 = vmatpush1.msra.mxu0 0.0
          %1154 = vmatprep.subr.mxu0 0.0
          %1155 = vmatpush1.msra.mxu0 0.0
          %1156 = vmatprep.subr.mxu0 0.0
          %1157 = vmatpush1.msra.mxu0 0.0
          %1158 = vmatprep.subr.mxu0 0.0
          %1159 = vmatpush1.msra.mxu0 0.0
          %1160 = vmatprep.subr.mxu0 0.0
          %1161 = vmatpush1.msra.mxu0 0.0
          %1162 = vmatprep.subr.mxu0 0.0
          %1163 = vmatpush1.msra.mxu0 0.0
          %1164 = vmatprep.subr.mxu0 0.0
          %1165 = vmatpush1.msra.mxu0 0.0
          %1166 = vmatprep.subr.mxu0 0.0
          %1167 = vmatpush1.msra.mxu0 0.0
          %1168 = vmatprep.subr.mxu0 0.0
          %1169 = vmatpush1.msra.mxu0 0.0
          %1170 = vmatprep.subr.mxu0 0.0
          %1171 = vmatpush1.msra.mxu0 0.0
          %1172 = vmatprep.subr.mxu0 0.0
          %1173 = vmatpush1.msra.mxu0 0.0
          %1174 = vmatprep.subr.mxu0 0.0
          %1175 = vmatpush1.msra.mxu0 0.0
          %1176 = vmatprep.subr.mxu0 0.0
          %1177 = vmatpush1.msra.mxu0 0.0
          %1178 = vmatprep.subr.mxu0 0.0
          %1179 = vmatpush1.msra.mxu0 0.0
          %1180 = vmatprep.subr.mxu0 0.0
          %1181 = vmatpush1.msra.mxu0 0.0
          %1182 = vmatprep.mubr.f32.mxu0 0.0
          %1183 = vmatmul.mubr.f32.gmra.mrb[0].mxu0 %v1116
          %v1184 = vpop.f32.mrb[0].mxu0
          %v1185 = vadd.f32 0.0, %v1184
          %v1186 = vpop.f32.mrb[0].mxu0
          %1187 = vdwg.mxu0
          %1188 = vrot.lane.b32.xlu0 %v684, 64
          %v1189 = vpop.permute.xlu0 %1188
          %v1192 = vsel %vm689, %v1033, 0
          %1194 = vmatprep.subr.mxu0 0.0
          %1195 = vmatpush1.msra.mxu0 %v1189
          %1196 = vmatprep.subr.mxu0 0.0
          %1197 = vmatpush1.msra.mxu0 0.0
          %1198 = vmatprep.subr.mxu0 0.0
          %1199 = vmatpush1.msra.mxu0 0.0
          %1200 = vmatprep.subr.mxu0 0.0
          %1201 = vmatpush1.msra.mxu0 0.0
          %1202 = vmatprep.subr.mxu0 0.0
          %1203 = vmatpush1.msra.mxu0 0.0
          %1204 = vmatprep.subr.mxu0 0.0
          %1205 = vmatpush1.msra.mxu0 0.0
          %1206 = vmatprep.subr.mxu0 0.0
          %1207 = vmatpush1.msra.mxu0 0.0
          %1208 = vmatprep.subr.mxu0 0.0
          %1209 = vmatpush1.msra.mxu0 0.0
          %1210 = vmatprep.subr.mxu0 0.0
          %1211 = vmatpush1.msra.mxu0 0.0
          %1212 = vmatprep.subr.mxu0 0.0
          %1213 = vmatpush1.msra.mxu0 0.0
          %1214 = vmatprep.subr.mxu0 0.0
          %1215 = vmatpush1.msra.mxu0 0.0
          %1216 = vmatprep.subr.mxu0 0.0
          %1217 = vmatpush1.msra.mxu0 0.0
          %1218 = vmatprep.subr.mxu0 0.0
          %1219 = vmatpush1.msra.mxu0 0.0
          %1220 = vmatprep.subr.mxu0 0.0
          %1221 = vmatpush1.msra.mxu0 0.0
          %1222 = vmatprep.subr.mxu0 0.0
          %1223 = vmatpush1.msra.mxu0 0.0
          %1224 = vmatprep.subr.mxu0 0.0
          %1225 = vmatpush1.msra.mxu0 0.0
          %1226 = vmatprep.subr.mxu0 0.0
          %1227 = vmatpush1.msra.mxu0 0.0
          %1228 = vmatprep.subr.mxu0 0.0
          %1229 = vmatpush1.msra.mxu0 0.0
          %1230 = vmatprep.subr.mxu0 0.0
          %1231 = vmatpush1.msra.mxu0 0.0
          %1232 = vmatprep.subr.mxu0 0.0
          %1233 = vmatpush1.msra.mxu0 0.0
          %1234 = vmatprep.subr.mxu0 0.0
          %1235 = vmatpush1.msra.mxu0 0.0
          %1236 = vmatprep.subr.mxu0 0.0
          %1237 = vmatpush1.msra.mxu0 0.0
          %1238 = vmatprep.subr.mxu0 0.0
          %1239 = vmatpush1.msra.mxu0 0.0
          %1240 = vmatprep.subr.mxu0 0.0
          %1241 = vmatpush1.msra.mxu0 0.0
          %1242 = vmatprep.subr.mxu0 0.0
          %1243 = vmatpush1.msra.mxu0 0.0
          %1244 = vmatprep.subr.mxu0 0.0
          %1245 = vmatpush1.msra.mxu0 0.0
          %1246 = vmatprep.subr.mxu0 0.0
          %1247 = vmatpush1.msra.mxu0 0.0
          %1248 = vmatprep.subr.mxu0 0.0
          %1249 = vmatpush1.msra.mxu0 0.0
          %1250 = vmatprep.subr.mxu0 0.0
          %1251 = vmatpush1.msra.mxu0 0.0
          %1252 = vmatprep.subr.mxu0 0.0
          %1253 = vmatpush1.msra.mxu0 0.0
          %1254 = vmatprep.subr.mxu0 0.0
          %1255 = vmatpush1.msra.mxu0 0.0
          %1256 = vmatprep.subr.mxu0 0.0
          %1257 = vmatpush1.msra.mxu0 0.0
          %1258 = vmatprep.mubr.f32.mxu0 0.0
          %1259 = vmatmul.mubr.f32.gmra.mrb[0].mxu0 %v1192
          %v1260 = vpop.f32.mrb[0].mxu0
          %v1261 = vadd.f32 0.0, %v1260
          %v1262 = vpop.f32.mrb[0].mxu0
          %1263 = vdwg.mxu0
          %1264 = vrot.lane.b32.xlu0 %v686, 64
          %v1265 = vpop.permute.xlu0 %1264
          %v1268 = vsel %vm689, %v1035, 0
          %1270 = vmatprep.subr.mxu0 0.0
          %1271 = vmatpush1.msra.mxu0 %v1265
          %1272 = vmatprep.subr.mxu0 0.0
          %1273 = vmatpush1.msra.mxu0 0.0
          %1274 = vmatprep.subr.mxu0 0.0
          %1275 = vmatpush1.msra.mxu0 0.0
          %1276 = vmatprep.subr.mxu0 0.0
          %1277 = vmatpush1.msra.mxu0 0.0
          %1278 = vmatprep.subr.mxu0 0.0
          %1279 = vmatpush1.msra.mxu0 0.0
          %1280 = vmatprep.subr.mxu0 0.0
          %1281 = vmatpush1.msra.mxu0 0.0
          %1282 = vmatprep.subr.mxu0 0.0
          %1283 = vmatpush1.msra.mxu0 0.0
          %1284 = vmatprep.subr.mxu0 0.0
          %1285 = vmatpush1.msra.mxu0 0.0
          %1286 = vmatprep.subr.mxu0 0.0
          %1287 = vmatpush1.msra.mxu0 0.0
          %1288 = vmatprep.subr.mxu0 0.0
          %1289 = vmatpush1.msra.mxu0 0.0
          %1290 = vmatprep.subr.mxu0 0.0
          %1291 = vmatpush1.msra.mxu0 0.0
          %1292 = vmatprep.subr.mxu0 0.0
          %1293 = vmatpush1.msra.mxu0 0.0
          %1294 = vmatprep.subr.mxu0 0.0
          %1295 = vmatpush1.msra.mxu0 0.0
          %1296 = vmatprep.subr.mxu0 0.0
          %1297 = vmatpush1.msra.mxu0 0.0
          %1298 = vmatprep.subr.mxu0 0.0
          %1299 = vmatpush1.msra.mxu0 0.0
          %1300 = vmatprep.subr.mxu0 0.0
          %1301 = vmatpush1.msra.mxu0 0.0
          %1302 = vmatprep.subr.mxu0 0.0
          %1303 = vmatpush1.msra.mxu0 0.0
          %1304 = vmatprep.subr.mxu0 0.0
          %1305 = vmatpush1.msra.mxu0 0.0
          %1306 = vmatprep.subr.mxu0 0.0
          %1307 = vmatpush1.msra.mxu0 0.0
          %1308 = vmatprep.subr.mxu0 0.0
          %1309 = vmatpush1.msra.mxu0 0.0
          %1310 = vmatprep.subr.mxu0 0.0
          %1311 = vmatpush1.msra.mxu0 0.0
          %1312 = vmatprep.subr.mxu0 0.0
          %1313 = vmatpush1.msra.mxu0 0.0
          %1314 = vmatprep.subr.mxu0 0.0
          %1315 = vmatpush1.msra.mxu0 0.0
          %1316 = vmatprep.subr.mxu0 0.0
          %1317 = vmatpush1.msra.mxu0 0.0
          %1318 = vmatprep.subr.mxu0 0.0
          %1319 = vmatpush1.msra.mxu0 0.0
          %1320 = vmatprep.subr.mxu0 0.0
          %1321 = vmatpush1.msra.mxu0 0.0
          %1322 = vmatprep.subr.mxu0 0.0
          %1323 = vmatpush1.msra.mxu0 0.0
          %1324 = vmatprep.subr.mxu0 0.0
          %1325 = vmatpush1.msra.mxu0 0.0
          %1326 = vmatprep.subr.mxu0 0.0
          %1327 = vmatpush1.msra.mxu0 0.0
          %1328 = vmatprep.subr.mxu0 0.0
          %1329 = vmatpush1.msra.mxu0 0.0
          %1330 = vmatprep.subr.mxu0 0.0
          %1331 = vmatpush1.msra.mxu0 0.0
          %1332 = vmatprep.subr.mxu0 0.0
          %1333 = vmatpush1.msra.mxu0 0.0
          %1334 = vmatprep.mubr.f32.mxu0 0.0
          %1335 = vmatmul.mubr.f32.gmra.mrb[0].mxu0 %v1268
          %v1336 = vpop.f32.mrb[0].mxu0
          %v1337 = vadd.f32 0.0, %v1336
          %v1338 = vpop.f32.mrb[0].mxu0
          %1339 = vdwg.mxu0
          %1341 = vrot.lane.b32.xlu0 %v1185, 8
          %v1342 = vpop.permute.xlu0 %1341
          %1345 = vrot.lane.b32.xlu0 %v1261, 16
          %v1346 = vpop.permute.xlu0 %1345
          %1349 = vrot.lane.b32.xlu0 %v1337, 24
          %v1350 = vpop.permute.xlu0 %1349
          %v1352 = vsel %vm689, %v1109, %v1342
          %vm1353 = vcmask 130048
          %v1354 = vsel %vm1353, %v1352, %v1346
          %vm1355 = vcmask 195584
          %v1356 = vsel %vm1355, %v1354, %v1350
          %s1357 = scalar_lea.vmem %s6, %s593
          %v1358 = vld [vmem:[%s1357] sm:$0xff]
          %v1359 = vld [vmem:[%s1357 + $0x8] sm:$0xff]
          %v1360 = vld [vmem:[%s1357 + $0x10] sm:$0xff]
          %v1361 = vld [vmem:[%s1357 + $0x18] sm:$0xff]
          %v1363 = vsel %vm551, %v1356, 0
          %1365 = vmatprep.subr.mxu0 0.0
          %1366 = vmatpush1.msra.mxu0 %v1358
          %1367 = vmatprep.subr.mxu0 0.0
          %1368 = vmatpush1.msra.mxu0 %v1359
          %1369 = vmatprep.subr.mxu0 0.0
          %1370 = vmatpush1.msra.mxu0 %v1360
          %1371 = vmatprep.subr.mxu0 0.0
          %1372 = vmatpush1.msra.mxu0 %v1361
          %1373 = vmatprep.subr.mxu0 0.0
          %1374 = vmatpush1.msra.mxu0 0.0
          %1375 = vmatprep.subr.mxu0 0.0
          %1376 = vmatpush1.msra.mxu0 0.0
          %1377 = vmatprep.subr.mxu0 0.0
          %1378 = vmatpush1.msra.mxu0 0.0
          %1379 = vmatprep.subr.mxu0 0.0
          %1380 = vmatpush1.msra.mxu0 0.0
          %1381 = vmatprep.subr.mxu0 0.0
          %1382 = vmatpush1.msra.mxu0 0.0
          %1383 = vmatprep.subr.mxu0 0.0
          %1384 = vmatpush1.msra.mxu0 0.0
          %1385 = vmatprep.subr.mxu0 0.0
          %1386 = vmatpush1.msra.mxu0 0.0
          %1387 = vmatprep.subr.mxu0 0.0
          %1388 = vmatpush1.msra.mxu0 0.0
          %1389 = vmatprep.subr.mxu0 0.0
          %1390 = vmatpush1.msra.mxu0 0.0
          %1391 = vmatprep.subr.mxu0 0.0
          %1392 = vmatpush1.msra.mxu0 0.0
          %1393 = vmatprep.subr.mxu0 0.0
          %1394 = vmatpush1.msra.mxu0 0.0
          %1395 = vmatprep.subr.mxu0 0.0
          %1396 = vmatpush1.msra.mxu0 0.0
          %1397 = vmatprep.subr.mxu0 0.0
          %1398 = vmatpush1.msra.mxu0 0.0
          %1399 = vmatprep.subr.mxu0 0.0
          %1400 = vmatpush1.msra.mxu0 0.0
          %1401 = vmatprep.subr.mxu0 0.0
          %1402 = vmatpush1.msra.mxu0 0.0
          %1403 = vmatprep.subr.mxu0 0.0
          %1404 = vmatpush1.msra.mxu0 0.0
          %1405 = vmatprep.subr.mxu0 0.0
          %1406 = vmatpush1.msra.mxu0 0.0
          %1407 = vmatprep.subr.mxu0 0.0
          %1408 = vmatpush1.msra.mxu0 0.0
          %1409 = vmatprep.subr.mxu0 0.0
          %1410 = vmatpush1.msra.mxu0 0.0
          %1411 = vmatprep.subr.mxu0 0.0
          %1412 = vmatpush1.msra.mxu0 0.0
          %1413 = vmatprep.subr.mxu0 0.0
          %1414 = vmatpush1.msra.mxu0 0.0
          %1415 = vmatprep.subr.mxu0 0.0
          %1416 = vmatpush1.msra.mxu0 0.0
          %1417 = vmatprep.subr.mxu0 0.0
          %1418 = vmatpush1.msra.mxu0 0.0
          %1419 = vmatprep.subr.mxu0 0.0
          %1420 = vmatpush1.msra.mxu0 0.0
          %1421 = vmatprep.subr.mxu0 0.0
          %1422 = vmatpush1.msra.mxu0 0.0
          %1423 = vmatprep.subr.mxu0 0.0
          %1424 = vmatpush1.msra.mxu0 0.0
          %1425 = vmatprep.subr.mxu0 0.0
          %1426 = vmatpush1.msra.mxu0 0.0
          %1427 = vmatprep.subr.mxu0 0.0
          %1428 = vmatpush1.msra.mxu0 0.0
          %1429 = vmatprep.mubr.f32.mxu0 0.0
          %1430 = vmatmul.mubr.f32.gmra.mrb[0].mxu0 %v1363
          %v1431 = vpop.f32.mrb[0].mxu0
          %v1432 = vadd.f32 0.0, %v1431
          %v1433 = vpop.f32.mrb[0].mxu0
          %1434 = vdwg.mxu0
          %v1435 = vadd.f32 %v560, %v1432
          %s1436 = scalar_lea.vmem %s7, %s555
          %v1437 = vld [vmem:[%s1436] sm:$0x1]
          %v1439 = vlaneseq
          %v1440 = vshrl.u32 %v1439, 7
          %v1441 = vsub.s32 0, %v1440
          %v1442 = vrot.slane %v1437, %v1441
          %v1444 = vadd.f32 %v1435, %v1442
          %s1445 = scalar_lea.vmem %s8, %s555
          %v1446 = vld [vmem:[%s1445] sm:$0x1]
          %s1447 = scalar_lea.vmem %s9, %s555
          %v1448 = vld [vmem:[%s1447] sm:$0x1]
          %v1449 = vsel %vm551, %v1444, 0.0
          %1450 = vadd.xlane.f32.xlu0 %v1449
          %v1451 = vpop.xlane.xlu0 %1450
          %v1452 = vmul.f32 %v1451, %v568
          %v1453 = vsub.f32 %v1444, %v1452
          %v1454 = vmul.f32 %v1453, %v1453
          %v1455 = vsel %vm551, %v1454, 0.0
          %1456 = vadd.xlane.f32.xlu0 %v1455
          %v1457 = vpop.xlane.xlu0 %1456
          %v1458 = vmul.f32 %v1457, %v568
          %v1459 = vadd.f32 %v1458, 1e-05
          %v1460 = vrsqrt.pop %v1459
          %v1461 = vmul.f32 %v1453, %v1460
          %v1463 = vlaneseq
          %v1464 = vshrl.u32 %v1463, 7
          %v1465 = vsub.s32 0, %v1464
          %v1466 = vrot.slane %v1446, %v1465
          %v1468 = vmul.f32 %v1461, %v1466
          %v1470 = vlaneseq
          %v1471 = vshrl.u32 %v1470, 7
          %v1472 = vsub.s32 0, %v1471
          %v1473 = vrot.slane %v1448, %v1472
          %v1475 = vadd.f32 %v1468, %v1473
          %s1476 = scalar_lea.vmem %s10, %s593
          %v1477 = vld [vmem:[%s1476] sm:$0xff]
          %v1478 = vld [vmem:[%s1476 + $0x8] sm:$0xff]
          %v1479 = vld [vmem:[%s1476 + $0x10] sm:$0xff]
          %v1480 = vld [vmem:[%s1476 + $0x18] sm:$0xff]
          %s1481 = scalar_lea.vmem %s11, %s555
          %v1482 = vld [vmem:[%s1481] sm:$0x1]
          %v1484 = vlaneseq
          %v1485 = vshrl.u32 %v1484, 7
          %v1486 = vsub.s32 0, %v1485
          %v1487 = vrot.slane %v1482, %v1486
          %v1490 = vsel %vm551, %v1475, 0
          %1492 = vmatprep.subr.mxu0 0.0
          %1493 = vmatpush1.msra.mxu0 %v1477
          %1494 = vmatprep.subr.mxu0 0.0
          %1495 = vmatpush1.msra.mxu0 %v1478
          %1496 = vmatprep.subr.mxu0 0.0
          %1497 = vmatpush1.msra.mxu0 %v1479
          %1498 = vmatprep.subr.mxu0 0.0
          %1499 = vmatpush1.msra.mxu0 %v1480
          %1500 = vmatprep.subr.mxu0 0.0
          %1501 = vmatpush1.msra.mxu0 0.0
          %1502 = vmatprep.subr.mxu0 0.0
          %1503 = vmatpush1.msra.mxu0 0.0
          %1504 = vmatprep.subr.mxu0 0.0
          %1505 = vmatpush1.msra.mxu0 0.0
          %1506 = vmatprep.subr.mxu0 0.0
          %1507 = vmatpush1.msra.mxu0 0.0
          %1508 = vmatprep.subr.mxu0 0.0
          %1509 = vmatpush1.msra.mxu0 0.0
          %1510 = vmatprep.subr.mxu0 0.0
          %1511 = vmatpush1.msra.mxu0 0.0
          %1512 = vmatprep.subr.mxu0 0.0
          %1513 = vmatpush1.msra.mxu0 0.0
          %1514 = vmatprep.subr.mxu0 0.0
          %1515 = vmatpush1.msra.mxu0 0.0
          %1516 = vmatprep.subr.mxu0 0.0
          %1517 = vmatpush1.msra.mxu0 0.0
          %1518 = vmatprep.subr.mxu0 0.0
          %1519 = vmatpush1.msra.mxu0 0.0
          %1520 = vmatprep.subr.mxu0 0.0
          %1521 = vmatpush1.msra.mxu0 0.0
          %1522 = vmatprep.subr.mxu0 0.0
          %1523 = vmatpush1.msra.mxu0 0.0
          %1524 = vmatprep.subr.mxu0 0.0
          %1525 = vmatpush1.msra.mxu0 0.0
          %1526 = vmatprep.subr.mxu0 0.0
          %1527 = vmatpush1.msra.mxu0 0.0
          %1528 = vmatprep.subr.mxu0 0.0
          %1529 = vmatpush1.msra.mxu0 0.0
          %1530 = vmatprep.subr.mxu0 0.0
          %1531 = vmatpush1.msra.mxu0 0.0
          %1532 = vmatprep.subr.mxu0 0.0
          %1533 = vmatpush1.msra.mxu0 0.0
          %1534 = vmatprep.subr.mxu0 0.0
          %1535 = vmatpush1.msra.mxu0 0.0
          %1536 = vmatprep.subr.mxu0 0.0
          %1537 = vmatpush1.msra.mxu0 0.0
          %1538 = vmatprep.subr.mxu0 0.0
          %1539 = vmatpush1.msra.mxu0 0.0
          %1540 = vmatprep.subr.mxu0 0.0
          %1541 = vmatpush1.msra.mxu0 0.0
          %1542 = vmatprep.subr.mxu0 0.0
          %1543 = vmatpush1.msra.mxu0 0.0
          %1544 = vmatprep.subr.mxu0 0.0
          %1545 = vmatpush1.msra.mxu0 0.0
          %1546 = vmatprep.subr.mxu0 0.0
          %1547 = vmatpush1.msra.mxu0 0.0
          %1548 = vmatprep.subr.mxu0 0.0
          %1549 = vmatpush1.msra.mxu0 0.0
          %1550 = vmatprep.subr.mxu0 0.0
          %1551 = vmatpush1.msra.mxu0 0.0
          %1552 = vmatprep.subr.mxu0 0.0
          %1553 = vmatpush1.msra.mxu0 0.0
          %1554 = vmatprep.subr.mxu0 0.0
          %1555 = vmatpush1.msra.mxu0 0.0
          %1556 = vmatprep.mubr.f32.mxu0 0.0
          %1557 = vmatmul.mubr.f32.gmra.mrb[0].mxu0 %v1490
          %v1558 = vpop.f32.mrb[0].mxu0
          %v1559 = vadd.f32 %v1487, %v1558
          %v1560 = vpop.f32.mrb[0].mxu0
          %1561 = vdwg.mxu0
          %v1562 = vmax.f32 %v1559, 0.0
          %s1563 = smul.u32 %s555, 64
          %s1564 = scalar_lea.vmem %s12, %s1563
          %v1565 = vld [vmem:[%s1564] sm:$0xff]
          %v1566 = vld [vmem:[%s1564 + $0x8] sm:$0xff]
          %v1567 = vld [vmem:[%s1564 + $0x10] sm:$0xff]
          %v1568 = vld [vmem:[%s1564 + $0x18] sm:$0xff]
          %v1569 = vld [vmem:[%s1564 + $0x20] sm:$0xff]
          %v1570 = vld [vmem:[%s1564 + $0x28] sm:$0xff]
          %v1571 = vld [vmem:[%s1564 + $0x30] sm:$0xff]
          %v1572 = vld [vmem:[%s1564 + $0x38] sm:$0xff]
          %s1573 = scalar_lea.vmem %s13, %s555
          %v1574 = vld [vmem:[%s1573] sm:$0x1]
          %v1576 = vlaneseq
          %v1577 = vshrl.u32 %v1576, 7
          %v1578 = vsub.s32 0, %v1577
          %v1579 = vrot.slane %v1574, %v1578
          %vm1581 = vcmask 523264
          %v1583 = vsel %vm1581, %v1562, 0
          %1585 = vmatprep.subr.mxu0 0.0
          %1586 = vmatpush1.msra.mxu0 %v1565
          %1587 = vmatprep.subr.mxu0 0.0
          %1588 = vmatpush1.msra.mxu0 %v1566
          %1589 = vmatprep.subr.mxu0 0.0
          %1590 = vmatpush1.msra.mxu0 %v1567
          %1591 = vmatprep.subr.mxu0 0.0
          %1592 = vmatpush1.msra.mxu0 %v1568
          %1593 = vmatprep.subr.mxu0 0.0
          %1594 = vmatpush1.msra.mxu0 %v1569
          %1595 = vmatprep.subr.mxu0 0.0
          %1596 = vmatpush1.msra.mxu0 %v1570
          %1597 = vmatprep.subr.mxu0 0.0
          %1598 = vmatpush1.msra.mxu0 %v1571
          %1599 = vmatprep.subr.mxu0 0.0
          %1600 = vmatpush1.msra.mxu0 %v1572
          %1601 = vmatprep.subr.mxu0 0.0
          %1602 = vmatpush1.msra.mxu0 0.0
          %1603 = vmatprep.subr.mxu0 0.0
          %1604 = vmatpush1.msra.mxu0 0.0
          %1605 = vmatprep.subr.mxu0 0.0
          %1606 = vmatpush1.msra.mxu0 0.0
          %1607 = vmatprep.subr.mxu0 0.0
          %1608 = vmatpush1.msra.mxu0 0.0
          %1609 = vmatprep.subr.mxu0 0.0
          %1610 = vmatpush1.msra.mxu0 0.0
          %1611 = vmatprep.subr.mxu0 0.0
          %1612 = vmatpush1.msra.mxu0 0.0
          %1613 = vmatprep.subr.mxu0 0.0
          %1614 = vmatpush1.msra.mxu0 0.0
          %1615 = vmatprep.subr.mxu0 0.0
          %1616 = vmatpush1.msra.mxu0 0.0
          %1617 = vmatprep.subr.mxu0 0.0
          %1618 = vmatpush1.msra.mxu0 0.0
          %1619 = vmatprep.subr.mxu0 0.0
          %1620 = vmatpush1.msra.mxu0 0.0
          %1621 = vmatprep.subr.mxu0 0.0
          %1622 = vmatpush1.msra.mxu0 0.0
          %1623 = vmatprep.subr.mxu0 0.0
          %1624 = vmatpush1.msra.mxu0 0.0
          %1625 = vmatprep.subr.mxu0 0.0
          %1626 = vmatpush1.msra.mxu0 0.0
          %1627 = vmatprep.subr.mxu0 0.0
          %1628 = vmatpush1.msra.mxu0 0.0
          %1629 = vmatprep.subr.mxu0 0.0
          %1630 = vmatpush1.msra.mxu0 0.0
          %1631 = vmatprep.subr.mxu0 0.0
          %1632 = vmatpush1.msra.mxu0 0.0
          %1633 = vmatprep.subr.mxu0 0.0
          %1634 = vmatpush1.msra.mxu0 0.0
          %1635 = vmatprep.subr.mxu0 0.0
          %1636 = vmatpush1.msra.mxu0 0.0
          %1637 = vmatprep.subr.mxu0 0.0
          %1638 = vmatpush1.msra.mxu0 0.0
          %1639 = vmatprep.subr.mxu0 0.0
          %1640 = vmatpush1.msra.mxu0 0.0
          %1641 = vmatprep.subr.mxu0 0.0
          %1642 = vmatpush1.msra.mxu0 0.0
          %1643 = vmatprep.subr.mxu0 0.0
          %1644 = vmatpush1.msra.mxu0 0.0
          %1645 = vmatprep.subr.mxu0 0.0
          %1646 = vmatpush1.msra.mxu0 0.0
          %1647 = vmatprep.subr.mxu0 0.0
          %1648 = vmatpush1.msra.mxu0 0.0
          %1649 = vmatprep.mubr.f32.mxu0 0.0
          %1650 = vmatmul.mubr.f32.gmra.mrb[0].mxu0 %v1583
          %v1651 = vpop.f32.mrb[0].mxu0
          %v1652 = vadd.f32 %v1579, %v1651
          %v1653 = vpop.f32.mrb[0].mxu0
          %1654 = vdwg.mxu0
          %v1655 = vadd.f32 %v1444, %v1652
          %1656 = vst.msk [vmem:[%s549] sm:$0xff] %vm551, %v1655
        $region97: #{tpu_custom_call.1} parent=83 // loop_footer
          %s559 = sadd.s32 1, %s555
        $region98: #{tpu_custom_call.1} parent=83 // loop_footer_branch
          %554 = sbr.rel target = $region94
        $region99: #{tpu_custom_call.1} parent=83 // loop_exit
          _
        %v1657 = vld [vmem:[%s549] sm:$0xff]
        %v1658 = vld [vmem:[%s14] sm:$0x1]
        %v1659 = vld [vmem:[%s15] sm:$0x1]
        %v1660 = vsel %vm551, %v1657, 0.0
        %1661 = vadd.xlane.f32.xlu0 %v1660
        %v1662 = vpop.xlane.xlu0 %1661
        %v1663 = vrcp.pop 32.0
        %v1664 = vmul.f32 %v1662, %v1663
        %v1665 = vsub.f32 %v1657, %v1664
        %v1666 = vmul.f32 %v1665, %v1665
        %v1667 = vsel %vm551, %v1666, 0.0
        %1668 = vadd.xlane.f32.xlu0 %v1667
        %v1669 = vpop.xlane.xlu0 %1668
        %v1670 = vmul.f32 %v1669, %v1663
        %v1671 = vadd.f32 %v1670, 1e-05
        %v1672 = vrsqrt.pop %v1671
        %v1673 = vmul.f32 %v1665, %v1672
        %v1675 = vlaneseq
        %v1676 = vshrl.u32 %v1675, 7
        %v1677 = vsub.s32 0, %v1676
        %v1678 = vrot.slane %v1658, %v1677
        %v1680 = vmul.f32 %v1673, %v1678
        %v1682 = vlaneseq
        %v1683 = vshrl.u32 %v1682, 7
        %v1684 = vsub.s32 0, %v1683
        %v1685 = vrot.slane %v1659, %v1684
        %v1687 = vadd.f32 %v1680, %v1685
        %1688 = vst.msk [vmem:[%s549] sm:$0xff] %vm551, %v1687
        %s1689 = sand.u32 %s383, 1
        %s1690 = scalar_lea.sflag [#allocation4], %s1689
        %s1691 = sand.u32 %s383, 1
        %s1692 = smul.addr %s1691, 8
        %s1693 = scalar_lea.vmem [#allocation7], %s1692
        // Predicated region
        $region100: #{tpu_custom_call.1} parent=83 // pred_check
          %p1694 = pneg %p393
        $region101: #{tpu_custom_call.1} parent=83 // pred_check_branch
          %1696 = sbr.rel (%p1694) target = $region103
        $region102: #{tpu_custom_call.1} parent=83 // pred_region
          %s1698 = ssub.s32 128, 128
          %1699 = vsyncadd %s1690, %s1698
          %s1700 = smul.addr %s34, 128
          %s1701 = scalar_lea.hbm %s16, %s1700
          %s1703 = sshll.u32 %s1693, 4
          %s1704 = int_to_ptr.vmem [resolvable:$true] %s1703
          %1706 = dma.vmem_to_hbm [thread:$0]  %s1704, 128, %s1701, %s1690
        $region103: #{tpu_custom_call.1} parent=83 // pred_fallthru
          _
      $region84: #{tpu_custom_call.1} parent=5 // pred_fallthru
        _
      %p1707 = scmp.le.s32.totalorder 2, %s29
      // Predicated region
      $region104: #{tpu_custom_call.1} parent=5 // pred_check
        %p1708 = pneg %p1707
      $region105: #{tpu_custom_call.1} parent=5 // pred_check_branch
        %1710 = sbr.rel (%p1708) target = $region107
      $region106: #{tpu_custom_call.1} parent=5 // pred_region
        %s1711 = ssub.s32 %s29, 2
        // Predicated region
        $region108: #{tpu_custom_call.1} parent=106 // pred_check
          %p1712 = pneg %p399
        $region109: #{tpu_custom_call.1} parent=106 // pred_check_branch
          %1714 = sbr.rel (%p1712) target = $region111
        $region110: #{tpu_custom_call.1} parent=106 // pred_region
          %s1715 = sand.u32 %s384, 1
          %s1716 = scalar_lea.sflag [#allocation4], %s1715
          %s1717 = sand.u32 %s384, 1
          %s1718 = smul.addr %s1717, 8
          %s1719 = scalar_lea.vmem [#allocation7], %s1718
          %1720 = dma.done %s1716, 128
        $region111: #{tpu_custom_call.1} parent=106 // pred_fallthru
          _
      $region107: #{tpu_custom_call.1} parent=5 // pred_fallthru
        _
    $region6: #{tpu_custom_call.1} parent=1 // loop_footer
      %s33 = sadd.s32 1, %s29
    $region7: #{tpu_custom_call.1} parent=1 // loop_footer_branch
      %28 = sbr.rel target = $region3
    $region8: #{tpu_custom_call.1} parent=1 // loop_exit
      _
    %1721 = vsyncpa [#allocation3], 1
    %s1722 = scalar_lea.sflag [#allocation3], 1
    %1723 = vsyncpa %s1722, 1
    %1724 = vsyncpa [#allocation6], 1
    %1725 = vsyncpa [#allocation4], 1
    %s1726 = scalar_lea.sflag [#allocation4], 1
    %1727 = vsyncpa %s1726, 1

</llo_original>
